<compile_context>
chip_gen: v6e
topology: v6e:2x2x1
jax: 0.10.0
libtpu: 0.0.40
codegen_flags: <defaults>
</compile_context>

<pallas_src>
import functools

import jax
import jax.numpy as jnp
from jax import lax
from jax.experimental import pallas as pl
from jax.experimental.pallas import tpu as pltpu

ALPHA = 0.9
TEMPERATURE = 0.07
BASE_TEMPERATURE = 0.07
NEG = -1e30  # large but FINITE negative for class-lane padding of the logits


def _round_up(x, m):
    return ((x + m - 1) // m) * m


def _pick_tile(n_pad, target):
    """Largest multiple of 128 <= target that divides n_pad (n_pad % 128 == 0)."""
    t = min(max(target, 128), n_pad)
    t = (t // 128) * 128
    t = max(t, 128)
    while n_pad % t:
        t -= 128
    return t


def _choose_tiles(n_pad, d_pad, c_pad):
    """Pick (tm, tk, vmem_limit_bytes) for the current TPU generation."""
    try:
        cap = int(pltpu.get_tpu_info().vmem_capacity_bytes)
    except Exception:
        cap = 64 * 2 ** 20  # conservative fallback (v7x-sized)
    vmem_limit = int(cap * 0.75)
    budget = int(cap * 0.5)

    def est(tm, tk):
        # double-buffered pipelined inputs (emb row/col + pred in bf16, labels,
        # npos) plus ~6 [tm,tk] f32 Mosaic temporaries for the softmax body.
        inputs = 2 * (tm * d_pad * 2 + tk * d_pad * 2 + tm * c_pad * 2
                      + tm * 4 + tk * 4 + tm * 4)
        temps = 6 * tm * tk * 4
        scratch = 4 * tm * 4 + 2 * 8 * 128 * 4
        return inputs + temps + scratch

    tm = _pick_tile(n_pad, 512)
    # Keep >= 2 row tiles when possible so a 2-TensorCore chip (v7x) can shard
    # the "parallel" axis across cores.
    if n_pad // tm < 2 and n_pad >= 256:
        tm = _pick_tile(n_pad, n_pad // 2)
    tk = _pick_tile(n_pad, 1024)
    while est(tm, tk) > budget and tk > 128:
        tk = _pick_tile(n_pad, tk - 128)
    while est(tm, tk) > budget and tm > 128:
        tm = _pick_tile(n_pad, tm - 128)
    return tm, tk, vmem_limit


def _mt_kernel(emb_r_ref, emb_c_ref, pred_ref, ycol_ref, yrow_ref, npos_ref,
               part_ref,
               m_sc, l_sc, spos_sc, ce_sc,
               *, n_valid, tm, tk):
    i = pl.program_id(0)          # row tile (parallel)
    j = pl.program_id(1)          # column tile (reduction, arbitrary, last)
    nj = pl.num_programs(1)

    # ------------- init per row tile + cross-entropy (depends only on i) -------------
    @pl.when(j == 0)
    def _():
        m_sc[...] = jnp.full_like(m_sc, -jnp.inf)
        l_sc[...] = jnp.zeros_like(l_sc)
        spos_sc[...] = jnp.zeros_like(spos_sc)

        # Cross-entropy over the padded class lanes (padded classes are -1e30,
        # padded rows masked by valid_row).  pred block is bf16 in VMEM,
        # upcast to f32 for the exp/log math.
        # TODO(synk): for very large class counts, tile the LSE over C as well.
        pred = pred_ref[...].astype(jnp.float32)                       # [TM, Cp]
        ycol = ycol_ref[...]                                           # [TM, 1]
        cls = lax.broadcasted_iota(jnp.int32, pred.shape, 1)
        picked = jnp.sum(jnp.where(cls == ycol, pred, 0.0),
                         axis=1, keepdims=True)                        # [TM, 1]
        pmax = jnp.max(pred, axis=1, keepdims=True)
        lse = jnp.log(jnp.sum(jnp.exp(pred - pmax), axis=1, keepdims=True)) + pmax
        rid1 = i * tm + lax.broadcasted_iota(jnp.int32, (tm, 1), 0)
        valid_row = (rid1 < n_valid).astype(jnp.float32)
        ce_sc[...] = jnp.sum((lse - picked) * valid_row, axis=0, keepdims=True)

    # ------------- SupCon: online LSE over column tile j -------------
    # Temperature was folded into the embeddings in the wrapper
    # (emb * 1/sqrt(T)), so this dot already yields sim / T.
    a = emb_r_ref[...]            # [TM, Dp] bf16
    b = emb_c_ref[...]            # [TK, Dp] bf16
    sim = lax.dot_general(a, b, (((1,), (1,)), ((), ())),
                          preferred_element_type=jnp.float32)          # [TM, TK]

    label_pos = ycol_ref[...] == yrow_ref[...]                         # [TM, TK]

    tile_max = jnp.max(sim, axis=1, keepdims=True)                     # any shift works
    m_prev = m_sc[...]
    m_new = jnp.maximum(m_prev, tile_max)
    rescale = jnp.exp(m_prev - m_new)
    # TODO(synk): on v6e/v7x, exp((sim-m_new).astype(bf16)) halves EUP pressure
    # if a bundle profile shows the EUP slot saturating (not valid on v5e).
    ex = jnp.exp(sim - m_new)
    m_sc[...] = m_new

    # Scalar tile classification: only tiles that touch the diagonal need the
    # self-pair mask, and only the last column tile contains padded columns
    # (padding < 128 <= tk).  Interior tiles skip all mask construction.
    row_lo = i * tm
    col_lo = j * tk
    diag_overlap = jnp.logical_and(row_lo < col_lo + tk, col_lo < row_lo + tm)
    needs_mask = jnp.logical_or(diag_overlap, j == nj - 1)

    @pl.when(needs_mask)
    def _():
        rid = row_lo + lax.broadcasted_iota(jnp.int32, (tm, tk), 0)
        cid = col_lo + lax.broadcasted_iota(jnp.int32, (tm, tk), 1)
        not_self = rid != cid
        denom_mask = jnp.logical_and(cid < n_valid, not_self)
        l_sc[...] = l_sc[...] * rescale + jnp.sum(
            jnp.where(denom_mask, ex, 0.0), axis=1, keepdims=True)
        spos_sc[...] += jnp.sum(
            jnp.where(jnp.logical_and(label_pos, not_self), sim, 0.0),
            axis=1, keepdims=True)

    @pl.when(jnp.logical_not(needs_mask))
    def _():
        l_sc[...] = l_sc[...] * rescale + jnp.sum(ex, axis=1, keepdims=True)
        spos_sc[...] += jnp.sum(jnp.where(label_pos, sim, 0.0),
                                axis=1, keepdims=True)

    # ------------- finalize row tile: write lane-dense partial sums -------------
    @pl.when(j == nj - 1)
    def _():
        rid1 = i * tm + lax.broadcasted_iota(jnp.int32, (tm, 1), 0)
        valid_row = (rid1 < n_valid).astype(jnp.float32)
        # mean_log_prob_pos = sum_pos(sim)/n_pos - log(sum_{valid,!=self} exp(sim))
        # n_pos is precomputed in the wrapper (>= 1 for valid rows, 1 for padding).
        mean_lp = spos_sc[...] / npos_ref[...] - (jnp.log(l_sc[...]) + m_sc[...])
        scl_part = jnp.sum(mean_lp * valid_row, axis=0, keepdims=True)  # (1,1)

        sub = lax.broadcasted_iota(jnp.int32, (1, 8, 128), 1)
        lane = lax.broadcasted_iota(jnp.int32, (1, 8, 128), 2)
        scl_b = scl_part.reshape(1, 1, 1)
        ce_b = ce_sc[...].reshape(1, 1, 1)
        part_ref[...] = jnp.where((sub == 0) & (lane == 0), scl_b,
                                  jnp.where((sub == 0) & (lane == 1), ce_b, 0.0))


@jax.jit
def multitask_loss(emb, pred, y):
    """emb: [2*bsz, D] float, pred: [2*bsz, C] float, y: [bsz] int."""
    bsz = y.shape[0]
    n = 2 * bsz
    d = emb.shape[1]
    c = pred.shape[1]

    n_pad = _round_up(max(n, 128), 128)
    d_pad = _round_up(d, 128)
    c_pad = _round_up(c, 128)
    tm, tk, vmem_limit = _choose_tiles(n_pad, d_pad, c_pad)
    ni = n_pad // tm
    nj = n_pad // tk

    # labels: cat(y, y), padded with -1 (matches nothing valid)
    y2 = jnp.concatenate([y, y]).astype(jnp.int32)
    y_pad = jnp.full((n_pad,), -1, jnp.int32).at[:n].set(y2)
    ycol = y_pad.reshape(n_pad, 1)
    yrow = y_pad.reshape(1, n_pad)

    # Per-anchor positive count.  Every label appears >= 2x in cat(y, y), so
    # every valid anchor has >= 1 positive; padded rows get 1 (masked later).
    npos2 = jnp.bincount(y2, length=c).astype(jnp.float32)[y2] - 1.0
    npos = jnp.ones((n_pad, 1), jnp.float32).at[:n, 0].set(npos2)

    # emb: fold 1/T into the operands (1/sqrt(T) each), zero-pad rows/feature
    # lanes, cast to bf16 for the MXU (f32 accumulate).
    inv_sqrt_t = 1.0 / (TEMPERATURE ** 0.5)
    emb_p = jnp.zeros((n_pad, d_pad), jnp.bfloat16).at[:n, :d].set(
        (emb.astype(jnp.float32) * inv_sqrt_t).astype(jnp.bfloat16))

    # pred: pad with a huge (finite) negative so padded class lanes vanish from
    # the LSE; padded rows are masked in-kernel.  bf16 halves VMEM residency.
    pred_p = jnp.full((n_pad, c_pad), NEG, jnp.bfloat16).at[:n, :c].set(
        pred.astype(jnp.bfloat16))

    kernel = functools.partial(_mt_kernel, n_valid=n, tm=tm, tk=tk)

    part = pl.pallas_call(
        kernel,
        out_shape=jax.ShapeDtypeStruct((ni, 8, 128), jnp.float32),
        grid=(ni, nj),
        in_specs=[
            pl.BlockSpec((tm, d_pad), lambda i, j: (i, 0)),   # emb, anchor rows
            # TODO(synk): if profiling shows exposed DMA waits on emb_c at large D,
            # add pipeline_mode=pl.Buffered(3) here.
            pl.BlockSpec((tk, d_pad), lambda i, j: (j, 0)),   # emb, contrast cols
            pl.BlockSpec((tm, c_pad), lambda i, j: (i, 0)),   # logits for CE (bf16)
            pl.BlockSpec((tm, 1), lambda i, j: (i, 0)),       # labels (column view)
            pl.BlockSpec((1, tk), lambda i, j: (0, j)),       # labels (row view)
            pl.BlockSpec((tm, 1), lambda i, j: (i, 0)),       # positive counts
        ],
        out_specs=pl.BlockSpec((1, 8, 128), lambda i, j: (i, 0, 0)),
        scratch_shapes=[
            pltpu.VMEM((tm, 1), jnp.float32),   # running row max
            pltpu.VMEM((tm, 1), jnp.float32),   # running sum exp (masked)
            pltpu.VMEM((tm, 1), jnp.float32),   # sum_pos(sim)
            pltpu.VMEM((1, 1), jnp.float32),    # CE partial for the row tile
        ],
        compiler_params=pltpu.CompilerParams(
            dimension_semantics=("parallel", "arbitrary"),
            vmem_limit_bytes=vmem_limit),
    )(emb_p, emb_p, pred_p, ycol, yrow, npos)

    # Tiny wrapper-side reduction of the per-row-tile partials.
    scl_sum = jnp.sum(part[:, 0, 0])
    ce_sum = jnp.sum(part[:, 0, 1])
    scl = -(TEMPERATURE / BASE_TEMPERATURE) * scl_sum / n
    ce = ce_sum / n
    loss = ALPHA * ce + (1.0 - ALPHA) * scl
    return {'loss': loss, 'scl': scl, 'ce': ce}


def _reference(emb, pred, y):
    """Pure-JAX reference matching the PyTorch semantics (true f32)."""
    bsz = y.shape[0]
    n = 2 * bsz
    y2 = jnp.concatenate([y, y])
    emb = emb.astype(jnp.float32)
    pred = pred.astype(jnp.float32)

    sim = jnp.dot(emb, emb.T, precision=lax.Precision.HIGHEST) / TEMPERATURE
    logits_mask = 1.0 - jnp.eye(n, dtype=jnp.float32)
    pos_mask = (y2[:, None] == y2[None, :]).astype(jnp.float32) * logits_mask
    logits = sim - jnp.max(sim, axis=1, keepdims=True)
    exp_logits = jnp.exp(logits) * logits_mask
    log_prob = logits - jnp.log(jnp.sum(exp_logits, axis=1, keepdims=True))
    mean_log_prob_pos = jnp.sum(pos_mask * log_prob, axis=1) / jnp.sum(pos_mask, axis=1)
    scl = -(TEMPERATURE / BASE_TEMPERATURE) * jnp.mean(mean_log_prob_pos)

    logp = pred - jax.scipy.special.logsumexp(pred, axis=1, keepdims=True)
    ce = -jnp.mean(logp[jnp.arange(n), y2])
    loss = ALPHA * ce + (1.0 - ALPHA) * scl
    return {'loss': loss, 'scl': scl, 'ce': ce}


if __name__ == "__main__":
    key = jax.random.PRNGKey(0)
    bsz, feat_dim, num_classes = 8, 32, 16

    k_emb, k_pred, k_y = jax.random.split(key, 3)
    emb = jax.random.normal(k_emb, (2 * bsz, feat_dim), dtype=jnp.float32)
    # SupCon features are conventionally L2-normalized by the model head.
    emb = emb / jnp.linalg.norm(emb, axis=1, keepdims=True)
    pred = jax.random.normal(k_pred, (2 * bsz, num_classes), dtype=jnp.float32)
    y = jax.random.randint(k_y, (bsz,), 0, num_classes, dtype=jnp.int32)

    out = multitask_loss(emb, pred, y)
    jax.block_until_ready(out)

    # Tight check: reference fed the same bf16-rounded operands the kernel sees
    # (embeddings scaled by 1/sqrt(T) before the bf16 cast, then unscaled; bf16
    # logits), both sides accumulate in f32.
    s = 1.0 / (TEMPERATURE ** 0.5)
    emb_eff = (emb * s).astype(jnp.bfloat16).astype(jnp.float32) / s
    pred_eff = pred.astype(jnp.bfloat16).astype(jnp.float32)
    ref_bf = _reference(emb_eff, pred_eff, y)
    for k in ('loss', 'scl', 'ce'):
        assert jnp.allclose(out[k], ref_bf[k], rtol=1e-3, atol=1e-3), \
            (k, out[k], ref_bf[k])

    # Loose check against the pure-f32 reference (only differences: bf16
    # rounding of the scaled embeddings and of the CE logits).
    ref = _reference(emb, pred, y)
    for k in ('loss', 'scl', 'ce'):
        assert jnp.allclose(out[k], ref[k], rtol=5e-2, atol=5e-2), \
            (k, out[k], ref[k])

    print("KERNEL_OK")
</pallas_src>

<mosaic_0001>
module attributes {stable_mosaic.version = 11 : i64} {
  func.func private @main(%arg0: i32) attributes {dimension_semantics = [#tpu.dimension_semantics<core_parallel>], iteration_bounds = array<i64: 2>, tpu.core_type = #tpu.core_type<sc_scalar_subcore>, window_params = []} {
    return
  }
}

module attributes {stable_mosaic.version = 11 : i64} {
  func.func private @main(%arg0: i32) attributes {dimension_semantics = [#tpu.dimension_semantics<core_parallel>], iteration_bounds = array<i64: 2>, tpu.core_type = #tpu.core_type<sc_scalar_subcore>, window_params = []} {
    return
  }
}

module attributes {stable_mosaic.version = 11 : i64} {
  func.func @_mt_kernel(%arg0: i32, %arg1: i32, %arg2: memref<128x128xbf16, #tpu.memory_space<vmem>>, %arg3: memref<128x128xbf16, #tpu.memory_space<vmem>>, %arg4: memref<128x128xbf16, #tpu.memory_space<vmem>>, %arg5: memref<128x1xi32, #tpu.memory_space<vmem>>, %arg6: memref<1x128xi32, #tpu.memory_space<vmem>>, %arg7: memref<128x1xf32, #tpu.memory_space<vmem>>, %arg8: memref<1x8x128xf32, #tpu.memory_space<vmem>>, %arg9: memref<128x1xf32, #tpu.memory_space<vmem>>, %arg10: memref<128x1xf32, #tpu.memory_space<vmem>>, %arg11: memref<128x1xf32, #tpu.memory_space<vmem>>, %arg12: memref<1x1xf32, #tpu.memory_space<vmem>>) attributes {dimension_semantics = [#tpu.dimension_semantics<parallel>, #tpu.dimension_semantics<arbitrary>], iteration_bounds = array<i64: 1, 1>, scalar_prefetch = 0 : i64, scratch_operands = 4 : i64, tpu.core_type = #tpu.core_type<tc>, window_params = [{transform_indices = @transform_0, window_bounds = array<i64: 128, 128>}, {transform_indices = @transform_1, window_bounds = array<i64: 128, 128>}, {transform_indices = @transform_2, window_bounds = array<i64: 128, 128>}, {transform_indices = @transform_3, window_bounds = array<i64: 128, 1>}, {transform_indices = @transform_4, window_bounds = array<i64: 1, 128>}, {transform_indices = @transform_5, window_bounds = array<i64: 128, 1>}, {transform_indices = @transform_6, window_bounds = array<i64: 1, 8, 128>}]} {
    %c0_i32 = arith.constant 0 : i32
    %0 = arith.cmpi eq, %arg1, %c0_i32 : i32
    %1 = arith.extui %0 : i1 to i32
    %c0_i32_0 = arith.constant 0 : i32
    %2 = arith.cmpi ne, %1, %c0_i32_0 : i32
    scf.if %2 {
      %cst_21 = arith.constant 0xFF800000 : f32
      %38 = vector.broadcast %cst_21 : f32 to vector<128x1xf32>
      %c0_22 = arith.constant 0 : index
      %c0_23 = arith.constant 0 : index
      %39 = vector.load %arg9[%c0_22, %c0_23] : memref<128x1xf32, #tpu.memory_space<vmem>>, vector<128x1xf32>
      tpu.vector_store %arg9[%c0_22, %c0_23], %38 {strides = array<i32>} : memref<128x1xf32, #tpu.memory_space<vmem>>, vector<128x1xf32>,
      %cst_24 = arith.constant 0.000000e+00 : f32
      %40 = vector.broadcast %cst_24 : f32 to vector<128x1xf32>
      %c0_25 = arith.constant 0 : index
      %c0_26 = arith.constant 0 : index
      %41 = vector.load %arg10[%c0_25, %c0_26] : memref<128x1xf32, #tpu.memory_space<vmem>>, vector<128x1xf32>
      tpu.vector_store %arg10[%c0_25, %c0_26], %40 {strides = array<i32>} : memref<128x1xf32, #tpu.memory_space<vmem>>, vector<128x1xf32>,
      %cst_27 = arith.constant 0.000000e+00 : f32
      %42 = vector.broadcast %cst_27 : f32 to vector<128x1xf32>
      %c0_28 = arith.constant 0 : index
      %c0_29 = arith.constant 0 : index
      %43 = vector.load %arg11[%c0_28, %c0_29] : memref<128x1xf32, #tpu.memory_space<vmem>>, vector<128x1xf32>
      tpu.vector_store %arg11[%c0_28, %c0_29], %42 {strides = array<i32>} : memref<128x1xf32, #tpu.memory_space<vmem>>, vector<128x1xf32>,
      %c0_30 = arith.constant 0 : index
      %c0_31 = arith.constant 0 : index
      %44 = vector.load %arg4[%c0_30, %c0_31] : memref<128x128xbf16, #tpu.memory_space<vmem>>, vector<128x128xbf16>
      %45 = arith.extf %44 : vector<128x128xbf16> to vector<128x128xf32>
      %c0_32 = arith.constant 0 : index
      %c0_33 = arith.constant 0 : index
      %46 = vector.load %arg5[%c0_32, %c0_33] : memref<128x1xi32, #tpu.memory_space<vmem>>, vector<128x1xi32>
      %47 = tpu.iota {dimensions = array<i32: 1>} : vector<128x128xi32>
      %48 = vector.broadcast %46 : vector<128x1xi32> to vector<128x128xi32>
      %49 = arith.cmpi eq, %47, %48 : vector<128x128xi32>
      %cst_34 = arith.constant 0.000000e+00 : f32
      %50 = vector.broadcast %cst_34 : f32 to vector<128x128xf32>
      %51 = arith.select %49, %45, %50 : vector<128x128xi1>, vector<128x128xf32>
      %cst_35 = arith.constant dense<0.000000e+00> : vector<128xf32>
      %52 = vector.multi_reduction <add>, %51, %cst_35 [1] : vector<128x128xf32> to vector<128xf32>
      %53 = vector.shape_cast %52 : vector<128xf32> to vector<128x1xf32>
      %cst_36 = arith.constant dense<0xFF800000> : vector<128xf32>
      %54 = vector.multi_reduction <maximumf>, %45, %cst_36 [1] : vector<128x128xf32> to vector<128xf32>
      %55 = vector.shape_cast %54 : vector<128xf32> to vector<128x1xf32>
      %56 = vector.broadcast %55 : vector<128x1xf32> to vector<128x128xf32>
      %57 = arith.subf %45, %56 : vector<128x128xf32>
      %58 = math.exp %57 : vector<128x128xf32>
      %cst_37 = arith.constant dense<0.000000e+00> : vector<128xf32>
      %59 = vector.multi_reduction <add>, %58, %cst_37 [1] : vector<128x128xf32> to vector<128xf32>
      %60 = vector.shape_cast %59 : vector<128xf32> to vector<128x1xf32>
      %61 = math.log %60 : vector<128x1xf32>
      %62 = arith.addf %61, %55 : vector<128x1xf32>
      %c128_i32_38 = arith.constant 128 : i32
      %63 = arith.muli %arg0, %c128_i32_38 : i32
      %64 = tpu.iota {dimensions = array<i32: 0>} : vector<128x1xi32>
      %65 = vector.broadcast %63 : i32 to vector<128x1xi32>
      %66 = arith.addi %65, %64 : vector<128x1xi32>
      %c16_i32 = arith.constant 16 : i32
      %67 = vector.broadcast %c16_i32 : i32 to vector<128x1xi32>
      %68 = arith.cmpi slt, %66, %67 : vector<128x1xi32>
      %69 = arith.extui %68 : vector<128x1xi1> to vector<128x1xi32>
      %70 = arith.sitofp %69 : vector<128x1xi32> to vector<128x1xf32>
      %71 = arith.subf %62, %53 : vector<128x1xf32>
      %72 = arith.mulf %71, %70 : vector<128x1xf32>
      %cst_39 = arith.constant dense<0.000000e+00> : vector<1xf32>
      %73 = vector.multi_reduction <add>, %72, %cst_39 [0] : vector<128x1xf32> to vector<1xf32>
      %74 = vector.shape_cast %73 : vector<1xf32> to vector<1x1xf32>
      %c0_40 = arith.constant 0 : index
      %c0_41 = arith.constant 0 : index
      %75 = vector.load %arg12[%c0_40, %c0_41] : memref<1x1xf32, #tpu.memory_space<vmem>>, vector<1x1xf32>
      tpu.vector_store %arg12[%c0_40, %c0_41], %74 {strides = array<i32>} : memref<1x1xf32, #tpu.memory_space<vmem>>, vector<1x1xf32>,
    } else {
    }
    %c0 = arith.constant 0 : index
    %c0_1 = arith.constant 0 : index
    %3 = vector.load %arg2[%c0, %c0_1] : memref<128x128xbf16, #tpu.memory_space<vmem>>, vector<128x128xbf16>
    %c0_2 = arith.constant 0 : index
    %c0_3 = arith.constant 0 : index
    %4 = vector.load %arg3[%c0_2, %c0_3] : memref<128x128xbf16, #tpu.memory_space<vmem>>, vector<128x128xbf16>
    %cst = arith.constant dense<0.000000e+00> : vector<128x128xf32>
    %5 = tpu.matmul %3, %4, %cst {dimension_numbers = #tpu.dot_dimension_numbers<[1], [1], [0], [0], [0, 0, 1, 0], [], []>} : vector<128x128xbf16>, vector<128x128xbf16>, vector<128x128xf32> -> vector<128x128xf32>
    %c0_4 = arith.constant 0 : index
    %c0_5 = arith.constant 0 : index
    %6 = vector.load %arg5[%c0_4, %c0_5] : memref<128x1xi32, #tpu.memory_space<vmem>>, vector<128x1xi32>
    %c0_6 = arith.constant 0 : index
    %c0_7 = arith.constant 0 : index
    %7 = vector.load %arg6[%c0_6, %c0_7] : memref<1x128xi32, #tpu.memory_space<vmem>>, vector<1x128xi32>
    %8 = vector.broadcast %6 : vector<128x1xi32> to vector<128x128xi32>
    %9 = vector.broadcast %7 : vector<1x128xi32> to vector<128x128xi32>
    %10 = arith.cmpi eq, %8, %9 : vector<128x128xi32>
    %cst_8 = arith.constant dense<0xFF800000> : vector<128xf32>
    %11 = vector.multi_reduction <maximumf>, %5, %cst_8 [1] : vector<128x128xf32> to vector<128xf32>
    %12 = vector.shape_cast %11 : vector<128xf32> to vector<128x1xf32>
    %c0_9 = arith.constant 0 : index
    %c0_10 = arith.constant 0 : index
    %13 = vector.load %arg9[%c0_9, %c0_10] : memref<128x1xf32, #tpu.memory_space<vmem>>, vector<128x1xf32>
    %14 = arith.maximumf %13, %12 : vector<128x1xf32>
    %15 = arith.subf %13, %14 : vector<128x1xf32>
    %16 = math.exp %15 : vector<128x1xf32>
    %17 = vector.broadcast %14 : vector<128x1xf32> to vector<128x128xf32>
    %18 = arith.subf %5, %17 : vector<128x128xf32>
    %19 = math.exp %18 : vector<128x128xf32>
    %c0_11 = arith.constant 0 : index
    %c0_12 = arith.constant 0 : index
    %20 = vector.load %arg9[%c0_11, %c0_12] : memref<128x1xf32, #tpu.memory_space<vmem>>, vector<128x1xf32>
    tpu.vector_store %arg9[%c0_11, %c0_12], %14 {strides = array<i32>} : memref<128x1xf32, #tpu.memory_space<vmem>>, vector<128x1xf32>,
    %c128_i32 = arith.constant 128 : i32
    %21 = arith.muli %arg0, %c128_i32 : i32
    %c128_i32_13 = arith.constant 128 : i32
    %22 = arith.muli %arg1, %c128_i32_13 : i32
    %c128_i32_14 = arith.constant 128 : i32
    %23 = arith.addi %22, %c128_i32_14 : i32
    %24 = arith.cmpi slt, %21, %23 : i32
    %c128_i32_15 = arith.constant 128 : i32
    %25 = arith.addi %21, %c128_i32_15 : i32
    %26 = arith.cmpi slt, %22, %25 : i32
    %27 = arith.andi %24, %26 : i1
    %c0_i32_16 = arith.constant 0 : i32
    %28 = arith.cmpi eq, %arg1, %c0_i32_16 : i32
    %29 = arith.ori %27, %28 : i1
    %30 = arith.extui %29 : i1 to i32
    %c0_i32_17 = arith.constant 0 : i32
    %31 = arith.cmpi ne, %30, %c0_i32_17 : i32
    scf.if %31 {
      %38 = tpu.iota {dimensions = array<i32: 0>} : vector<128x128xi32>
      %39 = vector.broadcast %21 : i32 to vector<128x128xi32>
      %40 = arith.addi %39, %38 : vector<128x128xi32>
      %41 = tpu.iota {dimensions = array<i32: 1>} : vector<128x128xi32>
      %42 = vector.broadcast %22 : i32 to vector<128x128xi32>
      %43 = arith.addi %42, %41 : vector<128x128xi32>
      %44 = arith.cmpi ne, %40, %43 : vector<128x128xi32>
      %c16_i32 = arith.constant 16 : i32
      %45 = vector.broadcast %c16_i32 : i32 to vector<128x128xi32>
      %46 = arith.cmpi slt, %43, %45 : vector<128x128xi32>
      %47 = arith.andi %46, %44 : vector<128x128xi1>
      %c0_21 = arith.constant 0 : index
      %c0_22 = arith.constant 0 : index
      %48 = vector.load %arg10[%c0_21, %c0_22] : memref<128x1xf32, #tpu.memory_space<vmem>>, vector<128x1xf32>
      %49 = arith.mulf %48, %16 : vector<128x1xf32>
      %cst_23 = arith.constant 0.000000e+00 : f32
      %50 = vector.broadcast %cst_23 : f32 to vector<128x128xf32>
      %51 = arith.select %47, %19, %50 : vector<128x128xi1>, vector<128x128xf32>
      %cst_24 = arith.constant dense<0.000000e+00> : vector<128xf32>
      %52 = vector.multi_reduction <add>, %51, %cst_24 [1] : vector<128x128xf32> to vector<128xf32>
      %53 = vector.shape_cast %52 : vector<128xf32> to vector<128x1xf32>
      %54 = arith.addf %49, %53 : vector<128x1xf32>
      %c0_25 = arith.constant 0 : index
      %c0_26 = arith.constant 0 : index
      %55 = vector.load %arg10[%c0_25, %c0_26] : memref<128x1xf32, #tpu.memory_space<vmem>>, vector<128x1xf32>
      tpu.vector_store %arg10[%c0_25, %c0_26], %54 {strides = array<i32>} : memref<128x1xf32, #tpu.memory_space<vmem>>, vector<128x1xf32>,
      %c0_27 = arith.constant 0 : index
      %c0_28 = arith.constant 0 : index
      %56 = vector.load %arg11[%c0_27, %c0_28] : memref<128x1xf32, #tpu.memory_space<vmem>>, vector<128x1xf32>
      %57 = arith.andi %10, %44 : vector<128x128xi1>
      %cst_29 = arith.constant 0.000000e+00 : f32
      %58 = vector.broadcast %cst_29 : f32 to vector<128x128xf32>
      %59 = arith.select %57, %5, %58 : vector<128x128xi1>, vector<128x128xf32>
      %cst_30 = arith.constant dense<0.000000e+00> : vector<128xf32>
      %60 = vector.multi_reduction <add>, %59, %cst_30 [1] : vector<128x128xf32> to vector<128xf32>
      %61 = vector.shape_cast %60 : vector<128xf32> to vector<128x1xf32>
      %62 = arith.addf %56, %61 : vector<128x1xf32>
      %c0_31 = arith.constant 0 : index
      %c0_32 = arith.constant 0 : index
      %63 = vector.load %arg11[%c0_31, %c0_32] : memref<128x1xf32, #tpu.memory_space<vmem>>, vector<128x1xf32>
      tpu.vector_store %arg11[%c0_31, %c0_32], %62 {strides = array<i32>} : memref<128x1xf32, #tpu.memory_space<vmem>>, vector<128x1xf32>,
    } else {
    }
    %true = arith.constant true
    %32 = arith.xori %29, %true : i1
    %33 = arith.extui %32 : i1 to i32
    %c0_i32_18 = arith.constant 0 : i32
    %34 = arith.cmpi ne, %33, %c0_i32_18 : i32
    scf.if %34 {
      %c0_21 = arith.constant 0 : index
      %c0_22 = arith.constant 0 : index
      %38 = vector.load %arg10[%c0_21, %c0_22] : memref<128x1xf32, #tpu.memory_space<vmem>>, vector<128x1xf32>
      %39 = arith.mulf %38, %16 : vector<128x1xf32>
      %cst_23 = arith.constant dense<0.000000e+00> : vector<128xf32>
      %40 = vector.multi_reduction <add>, %19, %cst_23 [1] : vector<128x128xf32> to vector<128xf32>
      %41 = vector.shape_cast %40 : vector<128xf32> to vector<128x1xf32>
      %42 = arith.addf %39, %41 : vector<128x1xf32>
      %c0_24 = arith.constant 0 : index
      %c0_25 = arith.constant 0 : index
      %43 = vector.load %arg10[%c0_24, %c0_25] : memref<128x1xf32, #tpu.memory_space<vmem>>, vector<128x1xf32>
      tpu.vector_store %arg10[%c0_24, %c0_25], %42 {strides = array<i32>} : memref<128x1xf32, #tpu.memory_space<vmem>>, vector<128x1xf32>,
      %c0_26 = arith.constant 0 : index
      %c0_27 = arith.constant 0 : index
      %44 = vector.load %arg11[%c0_26, %c0_27] : memref<128x1xf32, #tpu.memory_space<vmem>>, vector<128x1xf32>
      %cst_28 = arith.constant 0.000000e+00 : f32
      %45 = vector.broadcast %cst_28 : f32 to vector<128x128xf32>
      %46 = arith.select %10, %5, %45 : vector<128x128xi1>, vector<128x128xf32>
      %cst_29 = arith.constant dense<0.000000e+00> : vector<128xf32>
      %47 = vector.multi_reduction <add>, %46, %cst_29 [1] : vector<128x128xf32> to vector<128xf32>
      %48 = vector.shape_cast %47 : vector<128xf32> to vector<128x1xf32>
      %49 = arith.addf %44, %48 : vector<128x1xf32>
      %c0_30 = arith.constant 0 : index
      %c0_31 = arith.constant 0 : index
      %50 = vector.load %arg11[%c0_30, %c0_31] : memref<128x1xf32, #tpu.memory_space<vmem>>, vector<128x1xf32>
      tpu.vector_store %arg11[%c0_30, %c0_31], %49 {strides = array<i32>} : memref<128x1xf32, #tpu.memory_space<vmem>>, vector<128x1xf32>,
    } else {
    }
    %c0_i32_19 = arith.constant 0 : i32
    %35 = arith.cmpi eq, %arg1, %c0_i32_19 : i32
    %36 = arith.extui %35 : i1 to i32
    %c0_i32_20 = arith.constant 0 : i32
    %37 = arith.cmpi ne, %36, %c0_i32_20 : i32
    scf.if %37 {
      %c128_i32_21 = arith.constant 128 : i32
      %38 = arith.muli %arg0, %c128_i32_21 : i32
      %39 = tpu.iota {dimensions = array<i32: 0>} : vector<128x1xi32>
      %40 = vector.broadcast %38 : i32 to vector<128x1xi32>
      %41 = arith.addi %40, %39 : vector<128x1xi32>
      %c16_i32 = arith.constant 16 : i32
      %42 = vector.broadcast %c16_i32 : i32 to vector<128x1xi32>
      %43 = arith.cmpi slt, %41, %42 : vector<128x1xi32>
      %44 = arith.extui %43 : vector<128x1xi1> to vector<128x1xi32>
      %45 = arith.sitofp %44 : vector<128x1xi32> to vector<128x1xf32>
      %c0_22 = arith.constant 0 : index
      %c0_23 = arith.constant 0 : index
      %46 = vector.load %arg11[%c0_22, %c0_23] : memref<128x1xf32, #tpu.memory_space<vmem>>, vector<128x1xf32>
      %c0_24 = arith.constant 0 : index
      %c0_25 = arith.constant 0 : index
      %47 = vector.load %arg7[%c0_24, %c0_25] : memref<128x1xf32, #tpu.memory_space<vmem>>, vector<128x1xf32>
      %48 = arith.divf %46, %47 : vector<128x1xf32>
      %c0_26 = arith.constant 0 : index
      %c0_27 = arith.constant 0 : index
      %49 = vector.load %arg10[%c0_26, %c0_27] : memref<128x1xf32, #tpu.memory_space<vmem>>, vector<128x1xf32>
      %50 = math.log %49 : vector<128x1xf32>
      %c0_28 = arith.constant 0 : index
      %c0_29 = arith.constant 0 : index
      %51 = vector.load %arg9[%c0_28, %c0_29] : memref<128x1xf32, #tpu.memory_space<vmem>>, vector<128x1xf32>
      %52 = arith.addf %50, %51 : vector<128x1xf32>
      %53 = arith.subf %48, %52 : vector<128x1xf32>
      %54 = arith.mulf %53, %45 : vector<128x1xf32>
      %cst_30 = arith.constant dense<0.000000e+00> : vector<1xf32>
      %55 = vector.multi_reduction <add>, %54, %cst_30 [0] : vector<128x1xf32> to vector<1xf32>
      %56 = vector.shape_cast %55 : vector<1xf32> to vector<1x1xf32>
      %57 = tpu.iota {dimensions = array<i32: 1>} : vector<1x8x128xi32>
      %58 = tpu.iota {dimensions = array<i32: 2>} : vector<1x8x128xi32>
      %59 = vector.shape_cast %56 : vector<1x1xf32> to vector<1x1x1xf32>
      %c0_31 = arith.constant 0 : index
      %c0_32 = arith.constant 0 : index
      %60 = vector.load %arg12[%c0_31, %c0_32] : memref<1x1xf32, #tpu.memory_space<vmem>>, vector<1x1xf32>
      %61 = vector.shape_cast %60 : vector<1x1xf32> to vector<1x1x1xf32>
      %c0_i32_33 = arith.constant 0 : i32
      %62 = vector.broadcast %c0_i32_33 : i32 to vector<1x8x128xi32>
      %63 = arith.cmpi eq, %57, %62 : vector<1x8x128xi32>
      %c0_i32_34 = arith.constant 0 : i32
      %64 = vector.broadcast %c0_i32_34 : i32 to vector<1x8x128xi32>
      %65 = arith.cmpi eq, %58, %64 : vector<1x8x128xi32>
      %66 = arith.andi %63, %65 : vector<1x8x128xi1>
      %c0_i32_35 = arith.constant 0 : i32
      %67 = vector.broadcast %c0_i32_35 : i32 to vector<1x8x128xi32>
      %68 = arith.cmpi eq, %57, %67 : vector<1x8x128xi32>
      %c1_i32 = arith.constant 1 : i32
      %69 = vector.broadcast %c1_i32 : i32 to vector<1x8x128xi32>
      %70 = arith.cmpi eq, %58, %69 : vector<1x8x128xi32>
      %71 = arith.andi %68, %70 : vector<1x8x128xi1>
      %cst_36 = arith.constant 0.000000e+00 : f32
      %72 = vector.shape_cast %61 : vector<1x1x1xf32> to vector<1x1x1xf32>
      %73 = vector.broadcast %72 : vector<1x1x1xf32> to vector<1x8x128xf32>
      %74 = vector.broadcast %cst_36 : f32 to vector<1x8x128xf32>
      %75 = arith.select %71, %73, %74 : vector<1x8x128xi1>, vector<1x8x128xf32>
      %76 = vector.shape_cast %59 : vector<1x1x1xf32> to vector<1x1x1xf32>
      %77 = vector.broadcast %76 : vector<1x1x1xf32> to vector<1x8x128xf32>
      %78 = arith.select %66, %77, %75 : vector<1x8x128xi1>, vector<1x8x128xf32>
      %c0_37 = arith.constant 0 : index
      %c0_38 = arith.constant 0 : index
      %c0_39 = arith.constant 0 : index
      %79 = vector.load %arg8[%c0_37, %c0_38, %c0_39] : memref<1x8x128xf32, #tpu.memory_space<vmem>>, vector<1x8x128xf32>
      tpu.vector_store %arg8[%c0_37, %c0_38, %c0_39], %78 {strides = array<i32>} : memref<1x8x128xf32, #tpu.memory_space<vmem>>, vector<1x8x128xf32>,
    } else {
    }
    return
  }
  func.func @transform_0(%arg0: i32, %arg1: i32) -> (i32, i32) {
    %c0_i32 = arith.constant 0 : i32
    %c0_i32_0 = arith.constant 0 : i32
    return %arg0, %c0_i32 : i32, i32
  }
  func.func @transform_1(%arg0: i32, %arg1: i32) -> (i32, i32) {
    %c0_i32 = arith.constant 0 : i32
    %c0_i32_0 = arith.constant 0 : i32
    return %arg1, %c0_i32 : i32, i32
  }
  func.func @transform_2(%arg0: i32, %arg1: i32) -> (i32, i32) {
    %c0_i32 = arith.constant 0 : i32
    %c0_i32_0 = arith.constant 0 : i32
    return %arg0, %c0_i32 : i32, i32
  }
  func.func @transform_3(%arg0: i32, %arg1: i32) -> (i32, i32) {
    %c0_i32 = arith.constant 0 : i32
    %c0_i32_0 = arith.constant 0 : i32
    return %arg0, %c0_i32 : i32, i32
  }
  func.func @transform_4(%arg0: i32, %arg1: i32) -> (i32, i32) {
    %c0_i32 = arith.constant 0 : i32
    %c0_i32_0 = arith.constant 0 : i32
    return %c0_i32, %arg1 : i32, i32
  }
  func.func @transform_5(%arg0: i32, %arg1: i32) -> (i32, i32) {
    %c0_i32 = arith.constant 0 : i32
    %c0_i32_0 = arith.constant 0 : i32
    return %arg0, %c0_i32 : i32, i32
  }
  func.func @transform_6(%arg0: i32, %arg1: i32) -> (i32, i32, i32) {
    %c0_i32 = arith.constant 0 : i32
    %c0_i32_0 = arith.constant 0 : i32
    %c0_i32_1 = arith.constant 0 : i32
    return %arg0, %c0_i32, %c0_i32_0 : i32, i32, i32
  }
}

</mosaic_0001>

<llo_original>
// kernel: multitask_loss.1
$region0: #{multitask_loss.1}
  #allocation0 [shape = 'u32[]', space=smem, size = 0x4, offset = 0x4, fixed_abs, tag = 'smem constant byte address 0x4 - core index']
  #allocation1 [shape = 'u32[144,128]{1,0:T(1,128)}', space=vmem, size = 0x12000, scoped, tag = 'internal scratch']
  #allocation2 [shape = 'f32[128,1]{1,0:T(8,128)}', space=vmem, size = 0x10000, scoped, tag = 'scratch operand']
  #allocation3 [shape = 'f32[128,1]{1,0:T(8,128)}', space=vmem, size = 0x10000, scoped, tag = 'scratch operand']
  #allocation4 [shape = 'f32[128,1]{1,0:T(8,128)}', space=vmem, size = 0x10000, scoped, tag = 'scratch operand']
  #allocation5 [shape = 'f32[1,1]{1,0:T(1,128)}', space=vmem, size = 0x200, scoped, tag = 'scratch operand']
  %s0 = inlined_call_operand.vmem [shape: bf16[128,128], index: 0, kind: input, shape index: {}, may-alias: {0,1}]
  %s1 = inlined_call_operand.vmem [shape: bf16[128,128], index: 1, kind: input, shape index: {}, may-alias: {0,1}]
  %s2 = inlined_call_operand.vmem [shape: bf16[128,128], index: 2, kind: input, shape index: {}]
  %s3 = inlined_call_operand.vmem [shape: s32[128,1], index: 3, kind: input, shape index: {}]
  %s4 = inlined_call_operand.vmem [shape: s32[1,128], index: 4, kind: input, shape index: {}]
  %s5 = inlined_call_operand.vmem [shape: f32[128,1], index: 5, kind: input, shape index: {}]
  %s6 = inlined_call_operand.vmem [shape: f32[1,8,128], index: 6, kind: output, shape index: {}]
  %s7 = sld [smem:[#allocation0]]
  $region50: #{multitask_loss.1} parent=0
    _
  %s9 = ssub.s32 1, %s7
  %s10 = scalar_select 0, %s9, %s7
  // Predicated region
  $region2: #{multitask_loss.1} parent=0 // pred_check
    _
  $region3: #{multitask_loss.1} parent=0 // pred_check_branch
    %12 = sbr.rel (0) target = $region5
  $region4: #{multitask_loss.1} parent=0 // pred_region
    _
  $region5: #{multitask_loss.1} parent=0 // pred_fallthru
    _
  // Predicated region
  $region6: #{multitask_loss.1} parent=0 // pred_check
    _
  $region7: #{multitask_loss.1} parent=0 // pred_check_branch
    %14 = sbr.rel (0) target = $region9
  $region8: #{multitask_loss.1} parent=0 // pred_region
    _
  $region9: #{multitask_loss.1} parent=0 // pred_fallthru
    _
  // Predicated region
  $region10: #{multitask_loss.1} parent=0 // pred_check
    _
  $region11: #{multitask_loss.1} parent=0 // pred_check_branch
    %16 = sbr.rel (0) target = $region13
  $region12: #{multitask_loss.1} parent=0 // pred_region
    _
  $region13: #{multitask_loss.1} parent=0 // pred_fallthru
    _
  // Predicated region
  $region14: #{multitask_loss.1} parent=0 // pred_check
    _
  $region15: #{multitask_loss.1} parent=0 // pred_check_branch
    %18 = sbr.rel (0) target = $region17
  $region16: #{multitask_loss.1} parent=0 // pred_region
    _
  $region17: #{multitask_loss.1} parent=0 // pred_fallthru
    _
  // Predicated region
  $region18: #{multitask_loss.1} parent=0 // pred_check
    _
  $region19: #{multitask_loss.1} parent=0 // pred_check_branch
    %20 = sbr.rel (0) target = $region21
  $region20: #{multitask_loss.1} parent=0 // pred_region
    _
  $region21: #{multitask_loss.1} parent=0 // pred_fallthru
    _
  // Predicated region
  $region22: #{multitask_loss.1} parent=0 // pred_check
    _
  $region23: #{multitask_loss.1} parent=0 // pred_check_branch
    %22 = sbr.rel (0) target = $region25
  $region24: #{multitask_loss.1} parent=0 // pred_region
    _
  $region25: #{multitask_loss.1} parent=0 // pred_fallthru
    _
  %p24 = scmp.eq.s32.totalorder 0, 0
  // Predicated region
  $region26: #{multitask_loss.1} parent=0 // pred_check
    %p25 = pneg %p24
  $region27: #{multitask_loss.1} parent=0 // pred_check_branch
    %27 = sbr.rel (%p25) target = $region29
  $region28: #{multitask_loss.1} parent=0 // pred_region
    %vm28 = vcmask 7168
    %29 = vst.msk [vmem:[#allocation2] sm:$0xff] %vm28, -inf
    %30 = vst.msk [vmem:[#allocation2 + $0x8] sm:$0xff] %vm28, -inf
    %31 = vst.msk [vmem:[#allocation2 + $0x10] sm:$0xff] %vm28, -inf
    %32 = vst.msk [vmem:[#allocation2 + $0x18] sm:$0xff] %vm28, -inf
    %33 = vst.msk [vmem:[#allocation2 + $0x20] sm:$0xff] %vm28, -inf
    %34 = vst.msk [vmem:[#allocation2 + $0x28] sm:$0xff] %vm28, -inf
    %35 = vst.msk [vmem:[#allocation2 + $0x30] sm:$0xff] %vm28, -inf
    %36 = vst.msk [vmem:[#allocation2 + $0x38] sm:$0xff] %vm28, -inf
    %37 = vst.msk [vmem:[#allocation2 + $0x40] sm:$0xff] %vm28, -inf
    %38 = vst.msk [vmem:[#allocation2 + $0x48] sm:$0xff] %vm28, -inf
    %39 = vst.msk [vmem:[#allocation2 + $0x50] sm:$0xff] %vm28, -inf
    %40 = vst.msk [vmem:[#allocation2 + $0x58] sm:$0xff] %vm28, -inf
    %41 = vst.msk [vmem:[#allocation2 + $0x60] sm:$0xff] %vm28, -inf
    %42 = vst.msk [vmem:[#allocation2 + $0x68] sm:$0xff] %vm28, -inf
    %43 = vst.msk [vmem:[#allocation2 + $0x70] sm:$0xff] %vm28, -inf
    %44 = vst.msk [vmem:[#allocation2 + $0x78] sm:$0xff] %vm28, -inf
    %45 = vst.msk [vmem:[#allocation3] sm:$0xff] %vm28, 0.0
    %46 = vst.msk [vmem:[#allocation3 + $0x8] sm:$0xff] %vm28, 0.0
    %47 = vst.msk [vmem:[#allocation3 + $0x10] sm:$0xff] %vm28, 0.0
    %48 = vst.msk [vmem:[#allocation3 + $0x18] sm:$0xff] %vm28, 0.0
    %49 = vst.msk [vmem:[#allocation3 + $0x20] sm:$0xff] %vm28, 0.0
    %50 = vst.msk [vmem:[#allocation3 + $0x28] sm:$0xff] %vm28, 0.0
    %51 = vst.msk [vmem:[#allocation3 + $0x30] sm:$0xff] %vm28, 0.0
    %52 = vst.msk [vmem:[#allocation3 + $0x38] sm:$0xff] %vm28, 0.0
    %53 = vst.msk [vmem:[#allocation3 + $0x40] sm:$0xff] %vm28, 0.0
    %54 = vst.msk [vmem:[#allocation3 + $0x48] sm:$0xff] %vm28, 0.0
    %55 = vst.msk [vmem:[#allocation3 + $0x50] sm:$0xff] %vm28, 0.0
    %56 = vst.msk [vmem:[#allocation3 + $0x58] sm:$0xff] %vm28, 0.0
    %57 = vst.msk [vmem:[#allocation3 + $0x60] sm:$0xff] %vm28, 0.0
    %58 = vst.msk [vmem:[#allocation3 + $0x68] sm:$0xff] %vm28, 0.0
    %59 = vst.msk [vmem:[#allocation3 + $0x70] sm:$0xff] %vm28, 0.0
    %60 = vst.msk [vmem:[#allocation3 + $0x78] sm:$0xff] %vm28, 0.0
    %61 = vst.msk [vmem:[#allocation4] sm:$0xff] %vm28, 0.0
    %62 = vst.msk [vmem:[#allocation4 + $0x8] sm:$0xff] %vm28, 0.0
    %63 = vst.msk [vmem:[#allocation4 + $0x10] sm:$0xff] %vm28, 0.0
    %64 = vst.msk [vmem:[#allocation4 + $0x18] sm:$0xff] %vm28, 0.0
    %65 = vst.msk [vmem:[#allocation4 + $0x20] sm:$0xff] %vm28, 0.0
    %66 = vst.msk [vmem:[#allocation4 + $0x28] sm:$0xff] %vm28, 0.0
    %67 = vst.msk [vmem:[#allocation4 + $0x30] sm:$0xff] %vm28, 0.0
    %68 = vst.msk [vmem:[#allocation4 + $0x38] sm:$0xff] %vm28, 0.0
    %69 = vst.msk [vmem:[#allocation4 + $0x40] sm:$0xff] %vm28, 0.0
    %70 = vst.msk [vmem:[#allocation4 + $0x48] sm:$0xff] %vm28, 0.0
    %71 = vst.msk [vmem:[#allocation4 + $0x50] sm:$0xff] %vm28, 0.0
    %72 = vst.msk [vmem:[#allocation4 + $0x58] sm:$0xff] %vm28, 0.0
    %73 = vst.msk [vmem:[#allocation4 + $0x60] sm:$0xff] %vm28, 0.0
    %74 = vst.msk [vmem:[#allocation4 + $0x68] sm:$0xff] %vm28, 0.0
    %75 = vst.msk [vmem:[#allocation4 + $0x70] sm:$0xff] %vm28, 0.0
    %76 = vst.msk [vmem:[#allocation4 + $0x78] sm:$0xff] %vm28, 0.0
    %v77 = vld [vmem:[%s2] sm:$0xf]
    %v78 = vld [vmem:[%s2 + $0x4] sm:$0xf]
    %v79 = vld [vmem:[%s2 + $0x8] sm:$0xf]
    %v80 = vld [vmem:[%s2 + $0xc] sm:$0xf]
    %v81 = vld [vmem:[%s2 + $0x10] sm:$0xf]
    %v82 = vld [vmem:[%s2 + $0x14] sm:$0xf]
    %v83 = vld [vmem:[%s2 + $0x18] sm:$0xf]
    %v84 = vld [vmem:[%s2 + $0x1c] sm:$0xf]
    %v85 = vld [vmem:[%s2 + $0x20] sm:$0xf]
    %v86 = vld [vmem:[%s2 + $0x24] sm:$0xf]
    %v87 = vld [vmem:[%s2 + $0x28] sm:$0xf]
    %v88 = vld [vmem:[%s2 + $0x2c] sm:$0xf]
    %v89 = vld [vmem:[%s2 + $0x30] sm:$0xf]
    %v90 = vld [vmem:[%s2 + $0x34] sm:$0xf]
    %v91 = vld [vmem:[%s2 + $0x38] sm:$0xf]
    %v92 = vld [vmem:[%s2 + $0x3c] sm:$0xf]
    %v93 = vunpack.c.l.bf16 %v77
    %v94 = vunpack.c.l.bf16 %v78
    %v95 = vunpack.c.l.bf16 %v79
    %v96 = vunpack.c.l.bf16 %v80
    %v97 = vunpack.c.l.bf16 %v81
    %v98 = vunpack.c.l.bf16 %v82
    %v99 = vunpack.c.l.bf16 %v83
    %v100 = vunpack.c.l.bf16 %v84
    %v101 = vunpack.c.l.bf16 %v85
    %v102 = vunpack.c.l.bf16 %v86
    %v103 = vunpack.c.l.bf16 %v87
    %v104 = vunpack.c.l.bf16 %v88
    %v105 = vunpack.c.l.bf16 %v89
    %v106 = vunpack.c.l.bf16 %v90
    %v107 = vunpack.c.l.bf16 %v91
    %v108 = vunpack.c.l.bf16 %v92
    %v109 = vld [vmem:[%s3] sm:$0xff]
    %v110 = vld [vmem:[%s3 + $0x8] sm:$0xff]
    %v111 = vld [vmem:[%s3 + $0x10] sm:$0xff]
    %v112 = vld [vmem:[%s3 + $0x18] sm:$0xff]
    %v113 = vld [vmem:[%s3 + $0x20] sm:$0xff]
    %v114 = vld [vmem:[%s3 + $0x28] sm:$0xff]
    %v115 = vld [vmem:[%s3 + $0x30] sm:$0xff]
    %v116 = vld [vmem:[%s3 + $0x38] sm:$0xff]
    %v117 = vld [vmem:[%s3 + $0x40] sm:$0xff]
    %v118 = vld [vmem:[%s3 + $0x48] sm:$0xff]
    %v119 = vld [vmem:[%s3 + $0x50] sm:$0xff]
    %v120 = vld [vmem:[%s3 + $0x58] sm:$0xff]
    %v121 = vld [vmem:[%s3 + $0x60] sm:$0xff]
    %v122 = vld [vmem:[%s3 + $0x68] sm:$0xff]
    %v123 = vld [vmem:[%s3 + $0x70] sm:$0xff]
    %v124 = vld [vmem:[%s3 + $0x78] sm:$0xff]
    %v125 = vlaneseq
    %v126 = vand.u32 %v125, 127
    %127 = vset.pattern.permute.xlu0 0
    %128 = vperm.xlu0 %127, %v109
    %v129 = vpop.permute.xlu0 %128
    %130 = vset.pattern.permute.xlu0 0
    %131 = vperm.xlu0 %130, %v110
    %v132 = vpop.permute.xlu0 %131
    %133 = vset.pattern.permute.xlu0 0
    %134 = vperm.xlu0 %133, %v111
    %v135 = vpop.permute.xlu0 %134
    %136 = vset.pattern.permute.xlu0 0
    %137 = vperm.xlu0 %136, %v112
    %v138 = vpop.permute.xlu0 %137
    %139 = vset.pattern.permute.xlu0 0
    %140 = vperm.xlu0 %139, %v113
    %v141 = vpop.permute.xlu0 %140
    %142 = vset.pattern.permute.xlu0 0
    %143 = vperm.xlu0 %142, %v114
    %v144 = vpop.permute.xlu0 %143
    %145 = vset.pattern.permute.xlu0 0
    %146 = vperm.xlu0 %145, %v115
    %v147 = vpop.permute.xlu0 %146
    %148 = vset.pattern.permute.xlu0 0
    %149 = vperm.xlu0 %148, %v116
    %v150 = vpop.permute.xlu0 %149
    %151 = vset.pattern.permute.xlu0 0
    %152 = vperm.xlu0 %151, %v117
    %v153 = vpop.permute.xlu0 %152
    %154 = vset.pattern.permute.xlu0 0
    %155 = vperm.xlu0 %154, %v118
    %v156 = vpop.permute.xlu0 %155
    %157 = vset.pattern.permute.xlu0 0
    %158 = vperm.xlu0 %157, %v119
    %v159 = vpop.permute.xlu0 %158
    %160 = vset.pattern.permute.xlu0 0
    %161 = vperm.xlu0 %160, %v120
    %v162 = vpop.permute.xlu0 %161
    %163 = vset.pattern.permute.xlu0 0
    %164 = vperm.xlu0 %163, %v121
    %v165 = vpop.permute.xlu0 %164
    %166 = vset.pattern.permute.xlu0 0
    %167 = vperm.xlu0 %166, %v122
    %v168 = vpop.permute.xlu0 %167
    %169 = vset.pattern.permute.xlu0 0
    %170 = vperm.xlu0 %169, %v123
    %v171 = vpop.permute.xlu0 %170
    %172 = vset.pattern.permute.xlu0 0
    %173 = vperm.xlu0 %172, %v124
    %v174 = vpop.permute.xlu0 %173
    %vm175 = vcmp.eq.s32.totalorder %v126, %v129
    %vm176 = vcmp.eq.s32.totalorder %v126, %v132
    %vm177 = vcmp.eq.s32.totalorder %v126, %v135
    %vm178 = vcmp.eq.s32.totalorder %v126, %v138
    %vm179 = vcmp.eq.s32.totalorder %v126, %v141
    %vm180 = vcmp.eq.s32.totalorder %v126, %v144
    %vm181 = vcmp.eq.s32.totalorder %v126, %v147
    %vm182 = vcmp.eq.s32.totalorder %v126, %v150
    %vm183 = vcmp.eq.s32.totalorder %v126, %v153
    %vm184 = vcmp.eq.s32.totalorder %v126, %v156
    %vm185 = vcmp.eq.s32.totalorder %v126, %v159
    %vm186 = vcmp.eq.s32.totalorder %v126, %v162
    %vm187 = vcmp.eq.s32.totalorder %v126, %v165
    %vm188 = vcmp.eq.s32.totalorder %v126, %v168
    %vm189 = vcmp.eq.s32.totalorder %v126, %v171
    %vm190 = vcmp.eq.s32.totalorder %v126, %v174
    %v191 = vsel %vm175, %v93, 0.0
    %v192 = vsel %vm176, %v94, 0.0
    %v193 = vsel %vm177, %v95, 0.0
    %v194 = vsel %vm178, %v96, 0.0
    %v195 = vsel %vm179, %v97, 0.0
    %v196 = vsel %vm180, %v98, 0.0
    %v197 = vsel %vm181, %v99, 0.0
    %v198 = vsel %vm182, %v100, 0.0
    %v199 = vsel %vm183, %v101, 0.0
    %v200 = vsel %vm184, %v102, 0.0
    %v201 = vsel %vm185, %v103, 0.0
    %v202 = vsel %vm186, %v104, 0.0
    %v203 = vsel %vm187, %v105, 0.0
    %v204 = vsel %vm188, %v106, 0.0
    %v205 = vsel %vm189, %v107, 0.0
    %v206 = vsel %vm190, %v108, 0.0
    %207 = vadd.xlane.f32.xlu0 %v191
    %v208 = vpop.xlane.xlu0 %207
    %209 = vadd.xlane.f32.xlu0 %v192
    %v210 = vpop.xlane.xlu0 %209
    %211 = vadd.xlane.f32.xlu0 %v193
    %v212 = vpop.xlane.xlu0 %211
    %213 = vadd.xlane.f32.xlu0 %v194
    %v214 = vpop.xlane.xlu0 %213
    %215 = vadd.xlane.f32.xlu0 %v195
    %v216 = vpop.xlane.xlu0 %215
    %217 = vadd.xlane.f32.xlu0 %v196
    %v218 = vpop.xlane.xlu0 %217
    %219 = vadd.xlane.f32.xlu0 %v197
    %v220 = vpop.xlane.xlu0 %219
    %221 = vadd.xlane.f32.xlu0 %v198
    %v222 = vpop.xlane.xlu0 %221
    %223 = vadd.xlane.f32.xlu0 %v199
    %v224 = vpop.xlane.xlu0 %223
    %225 = vadd.xlane.f32.xlu0 %v200
    %v226 = vpop.xlane.xlu0 %225
    %227 = vadd.xlane.f32.xlu0 %v201
    %v228 = vpop.xlane.xlu0 %227
    %229 = vadd.xlane.f32.xlu0 %v202
    %v230 = vpop.xlane.xlu0 %229
    %231 = vadd.xlane.f32.xlu0 %v203
    %v232 = vpop.xlane.xlu0 %231
    %233 = vadd.xlane.f32.xlu0 %v204
    %v234 = vpop.xlane.xlu0 %233
    %235 = vadd.xlane.f32.xlu0 %v205
    %v236 = vpop.xlane.xlu0 %235
    %237 = vadd.xlane.f32.xlu0 %v206
    %v238 = vpop.xlane.xlu0 %237
    %239 = vmax.xlane.f32.xlu0 %v93
    %v240 = vpop.xlane.xlu0 %239
    %241 = vmax.xlane.f32.xlu0 %v94
    %v242 = vpop.xlane.xlu0 %241
    %243 = vmax.xlane.f32.xlu0 %v95
    %v244 = vpop.xlane.xlu0 %243
    %245 = vmax.xlane.f32.xlu0 %v96
    %v246 = vpop.xlane.xlu0 %245
    %247 = vmax.xlane.f32.xlu0 %v97
    %v248 = vpop.xlane.xlu0 %247
    %249 = vmax.xlane.f32.xlu0 %v98
    %v250 = vpop.xlane.xlu0 %249
    %251 = vmax.xlane.f32.xlu0 %v99
    %v252 = vpop.xlane.xlu0 %251
    %253 = vmax.xlane.f32.xlu0 %v100
    %v254 = vpop.xlane.xlu0 %253
    %255 = vmax.xlane.f32.xlu0 %v101
    %v256 = vpop.xlane.xlu0 %255
    %257 = vmax.xlane.f32.xlu0 %v102
    %v258 = vpop.xlane.xlu0 %257
    %259 = vmax.xlane.f32.xlu0 %v103
    %v260 = vpop.xlane.xlu0 %259
    %261 = vmax.xlane.f32.xlu0 %v104
    %v262 = vpop.xlane.xlu0 %261
    %263 = vmax.xlane.f32.xlu0 %v105
    %v264 = vpop.xlane.xlu0 %263
    %265 = vmax.xlane.f32.xlu0 %v106
    %v266 = vpop.xlane.xlu0 %265
    %267 = vmax.xlane.f32.xlu0 %v107
    %v268 = vpop.xlane.xlu0 %267
    %269 = vmax.xlane.f32.xlu0 %v108
    %v270 = vpop.xlane.xlu0 %269
    %v271 = vsub.f32 %v93, %v240
    %v272 = vsub.f32 %v94, %v242
    %v273 = vsub.f32 %v95, %v244
    %v274 = vsub.f32 %v96, %v246
    %v275 = vsub.f32 %v97, %v248
    %v276 = vsub.f32 %v98, %v250
    %v277 = vsub.f32 %v99, %v252
    %v278 = vsub.f32 %v100, %v254
    %v279 = vsub.f32 %v101, %v256
    %v280 = vsub.f32 %v102, %v258
    %v281 = vsub.f32 %v103, %v260
    %v282 = vsub.f32 %v104, %v262
    %v283 = vsub.f32 %v105, %v264
    %v284 = vsub.f32 %v106, %v266
    %v285 = vsub.f32 %v107, %v268
    %v286 = vsub.f32 %v108, %v270
    %v287 = vmul.f32 %v271, 1.442695
    %v288 = vpow.pop %v287
    %v289 = vmul.f32 %v272, 1.442695
    %v290 = vpow.pop %v289
    %v291 = vmul.f32 %v273, 1.442695
    %v292 = vpow.pop %v291
    %v293 = vmul.f32 %v274, 1.442695
    %v294 = vpow.pop %v293
    %v295 = vmul.f32 %v275, 1.442695
    %v296 = vpow.pop %v295
    %v297 = vmul.f32 %v276, 1.442695
    %v298 = vpow.pop %v297
    %v299 = vmul.f32 %v277, 1.442695
    %v300 = vpow.pop %v299
    %v301 = vmul.f32 %v278, 1.442695
    %v302 = vpow.pop %v301
    %v303 = vmul.f32 %v279, 1.442695
    %v304 = vpow.pop %v303
    %v305 = vmul.f32 %v280, 1.442695
    %v306 = vpow.pop %v305
    %v307 = vmul.f32 %v281, 1.442695
    %v308 = vpow.pop %v307
    %v309 = vmul.f32 %v282, 1.442695
    %v310 = vpow.pop %v309
    %v311 = vmul.f32 %v283, 1.442695
    %v312 = vpow.pop %v311
    %v313 = vmul.f32 %v284, 1.442695
    %v314 = vpow.pop %v313
    %v315 = vmul.f32 %v285, 1.442695
    %v316 = vpow.pop %v315
    %v317 = vmul.f32 %v286, 1.442695
    %v318 = vpow.pop %v317
    %319 = vadd.xlane.f32.xlu0 %v288
    %v320 = vpop.xlane.xlu0 %319
    %321 = vadd.xlane.f32.xlu0 %v290
    %v322 = vpop.xlane.xlu0 %321
    %323 = vadd.xlane.f32.xlu0 %v292
    %v324 = vpop.xlane.xlu0 %323
    %325 = vadd.xlane.f32.xlu0 %v294
    %v326 = vpop.xlane.xlu0 %325
    %327 = vadd.xlane.f32.xlu0 %v296
    %v328 = vpop.xlane.xlu0 %327
    %329 = vadd.xlane.f32.xlu0 %v298
    %v330 = vpop.xlane.xlu0 %329
    %331 = vadd.xlane.f32.xlu0 %v300
    %v332 = vpop.xlane.xlu0 %331
    %333 = vadd.xlane.f32.xlu0 %v302
    %v334 = vpop.xlane.xlu0 %333
    %335 = vadd.xlane.f32.xlu0 %v304
    %v336 = vpop.xlane.xlu0 %335
    %337 = vadd.xlane.f32.xlu0 %v306
    %v338 = vpop.xlane.xlu0 %337
    %339 = vadd.xlane.f32.xlu0 %v308
    %v340 = vpop.xlane.xlu0 %339
    %341 = vadd.xlane.f32.xlu0 %v310
    %v342 = vpop.xlane.xlu0 %341
    %343 = vadd.xlane.f32.xlu0 %v312
    %v344 = vpop.xlane.xlu0 %343
    %345 = vadd.xlane.f32.xlu0 %v314
    %v346 = vpop.xlane.xlu0 %345
    %347 = vadd.xlane.f32.xlu0 %v316
    %v348 = vpop.xlane.xlu0 %347
    %349 = vadd.xlane.f32.xlu0 %v318
    %v350 = vpop.xlane.xlu0 %349
    %v351 = vlog2.pop %v320
    %v352 = vmul.f32 %v351, 0.6931472
    %v353 = vlog2.pop %v322
    %v354 = vmul.f32 %v353, 0.6931472
    %v355 = vlog2.pop %v324
    %v356 = vmul.f32 %v355, 0.6931472
    %v357 = vlog2.pop %v326
    %v358 = vmul.f32 %v357, 0.6931472
    %v359 = vlog2.pop %v328
    %v360 = vmul.f32 %v359, 0.6931472
    %v361 = vlog2.pop %v330
    %v362 = vmul.f32 %v361, 0.6931472
    %v363 = vlog2.pop %v332
    %v364 = vmul.f32 %v363, 0.6931472
    %v365 = vlog2.pop %v334
    %v366 = vmul.f32 %v365, 0.6931472
    %v367 = vlog2.pop %v336
    %v368 = vmul.f32 %v367, 0.6931472
    %v369 = vlog2.pop %v338
    %v370 = vmul.f32 %v369, 0.6931472
    %v371 = vlog2.pop %v340
    %v372 = vmul.f32 %v371, 0.6931472
    %v373 = vlog2.pop %v342
    %v374 = vmul.f32 %v373, 0.6931472
    %v375 = vlog2.pop %v344
    %v376 = vmul.f32 %v375, 0.6931472
    %v377 = vlog2.pop %v346
    %v378 = vmul.f32 %v377, 0.6931472
    %v379 = vlog2.pop %v348
    %v380 = vmul.f32 %v379, 0.6931472
    %v381 = vlog2.pop %v350
    %v382 = vmul.f32 %v381, 0.6931472
    %v383 = vadd.f32 %v352, %v240
    %v384 = vadd.f32 %v354, %v242
    %v385 = vadd.f32 %v356, %v244
    %v386 = vadd.f32 %v358, %v246
    %v387 = vadd.f32 %v360, %v248
    %v388 = vadd.f32 %v362, %v250
    %v389 = vadd.f32 %v364, %v252
    %v390 = vadd.f32 %v366, %v254
    %v391 = vadd.f32 %v368, %v256
    %v392 = vadd.f32 %v370, %v258
    %v393 = vadd.f32 %v372, %v260
    %v394 = vadd.f32 %v374, %v262
    %v395 = vadd.f32 %v376, %v264
    %v396 = vadd.f32 %v378, %v266
    %v397 = vadd.f32 %v380, %v268
    %v398 = vadd.f32 %v382, %v270
    %s399 = smul.u32 0, 128
    %v400 = vlaneseq
    %v401 = vshrl.u32 %v400, 7
    %v402 = vadd.s32 %v401, 8
    %v403 = vadd.s32 %v401, 16
    %v404 = vadd.s32 %v401, 24
    %v405 = vadd.s32 %v401, 32
    %v406 = vadd.s32 %v401, 40
    %v407 = vadd.s32 %v401, 48
    %v408 = vadd.s32 %v401, 56
    %v409 = vadd.s32 %v401, 64
    %v410 = vadd.s32 %v401, 72
    %v411 = vadd.s32 %v401, 80
    %v412 = vadd.s32 %v401, 88
    %v413 = vadd.s32 %v401, 96
    %v414 = vadd.s32 %v401, 104
    %v415 = vadd.s32 %v401, 112
    %v416 = vadd.s32 %v401, 120
    %v417 = vstv %s399
    %v418 = vadd.s32 %v417, %v401
    %v419 = vadd.s32 %v417, %v402
    %v420 = vadd.s32 %v417, %v403
    %v421 = vadd.s32 %v417, %v404
    %v422 = vadd.s32 %v417, %v405
    %v423 = vadd.s32 %v417, %v406
    %v424 = vadd.s32 %v417, %v407
    %v425 = vadd.s32 %v417, %v408
    %v426 = vadd.s32 %v417, %v409
    %v427 = vadd.s32 %v417, %v410
    %v428 = vadd.s32 %v417, %v411
    %v429 = vadd.s32 %v417, %v412
    %v430 = vadd.s32 %v417, %v413
    %v431 = vadd.s32 %v417, %v414
    %v432 = vadd.s32 %v417, %v415
    %v433 = vadd.s32 %v417, %v416
    %vm434 = vcmp.lt.s32.totalorder %v418, 16
    %vm435 = vcmp.lt.s32.totalorder %v419, 16
    %vm436 = vcmp.lt.s32.totalorder %v420, 16
    %vm437 = vcmp.lt.s32.totalorder %v421, 16
    %vm438 = vcmp.lt.s32.totalorder %v422, 16
    %vm439 = vcmp.lt.s32.totalorder %v423, 16
    %vm440 = vcmp.lt.s32.totalorder %v424, 16
    %vm441 = vcmp.lt.s32.totalorder %v425, 16
    %vm442 = vcmp.lt.s32.totalorder %v426, 16
    %vm443 = vcmp.lt.s32.totalorder %v427, 16
    %vm444 = vcmp.lt.s32.totalorder %v428, 16
    %vm445 = vcmp.lt.s32.totalorder %v429, 16
    %vm446 = vcmp.lt.s32.totalorder %v430, 16
    %vm447 = vcmp.lt.s32.totalorder %v431, 16
    %vm448 = vcmp.lt.s32.totalorder %v432, 16
    %vm449 = vcmp.lt.s32.totalorder %v433, 16
    %v450 = vsel %vm434, 1, 0
    %v451 = vsel %vm435, 1, 0
    %v452 = vsel %vm436, 1, 0
    %v453 = vsel %vm437, 1, 0
    %v454 = vsel %vm438, 1, 0
    %v455 = vsel %vm439, 1, 0
    %v456 = vsel %vm440, 1, 0
    %v457 = vsel %vm441, 1, 0
    %v458 = vsel %vm442, 1, 0
    %v459 = vsel %vm443, 1, 0
    %v460 = vsel %vm444, 1, 0
    %v461 = vsel %vm445, 1, 0
    %v462 = vsel %vm446, 1, 0
    %v463 = vsel %vm447, 1, 0
    %v464 = vsel %vm448, 1, 0
    %v465 = vsel %vm449, 1, 0
    %v466 = vcvt.s32.f32 %v450
    %v467 = vcvt.s32.f32 %v451
    %v468 = vcvt.s32.f32 %v452
    %v469 = vcvt.s32.f32 %v453
    %v470 = vcvt.s32.f32 %v454
    %v471 = vcvt.s32.f32 %v455
    %v472 = vcvt.s32.f32 %v456
    %v473 = vcvt.s32.f32 %v457
    %v474 = vcvt.s32.f32 %v458
    %v475 = vcvt.s32.f32 %v459
    %v476 = vcvt.s32.f32 %v460
    %v477 = vcvt.s32.f32 %v461
    %v478 = vcvt.s32.f32 %v462
    %v479 = vcvt.s32.f32 %v463
    %v480 = vcvt.s32.f32 %v464
    %v481 = vcvt.s32.f32 %v465
    %v482 = vsub.f32 %v383, %v208
    %v483 = vsub.f32 %v384, %v210
    %v484 = vsub.f32 %v385, %v212
    %v485 = vsub.f32 %v386, %v214
    %v486 = vsub.f32 %v387, %v216
    %v487 = vsub.f32 %v388, %v218
    %v488 = vsub.f32 %v389, %v220
    %v489 = vsub.f32 %v390, %v222
    %v490 = vsub.f32 %v391, %v224
    %v491 = vsub.f32 %v392, %v226
    %v492 = vsub.f32 %v393, %v228
    %v493 = vsub.f32 %v394, %v230
    %v494 = vsub.f32 %v395, %v232
    %v495 = vsub.f32 %v396, %v234
    %v496 = vsub.f32 %v397, %v236
    %v497 = vsub.f32 %v398, %v238
    %v498 = vmul.f32 %v482, %v466
    %v499 = vmul.f32 %v483, %v467
    %v500 = vmul.f32 %v484, %v468
    %v501 = vmul.f32 %v485, %v469
    %v502 = vmul.f32 %v486, %v470
    %v503 = vmul.f32 %v487, %v471
    %v504 = vmul.f32 %v488, %v472
    %v505 = vmul.f32 %v489, %v473
    %v506 = vmul.f32 %v490, %v474
    %v507 = vmul.f32 %v491, %v475
    %v508 = vmul.f32 %v492, %v476
    %v509 = vmul.f32 %v493, %v477
    %v510 = vmul.f32 %v494, %v478
    %v511 = vmul.f32 %v495, %v479
    %v512 = vmul.f32 %v496, %v480
    %v513 = vmul.f32 %v497, %v481
    %v514 = vadd.f32 %v498, %v499
    %v515 = vadd.f32 %v514, %v500
    %v516 = vadd.f32 %v515, %v501
    %v517 = vadd.f32 %v516, %v502
    %v518 = vadd.f32 %v517, %v503
    %v519 = vadd.f32 %v518, %v504
    %v520 = vadd.f32 %v519, %v505
    %v521 = vadd.f32 %v520, %v506
    %v522 = vadd.f32 %v521, %v507
    %v523 = vadd.f32 %v522, %v508
    %v524 = vadd.f32 %v523, %v509
    %v525 = vadd.f32 %v524, %v510
    %v526 = vadd.f32 %v525, %v511
    %v527 = vadd.f32 %v526, %v512
    %v528 = vadd.f32 %v527, %v513
    %v529 = vrot.slane %v528, 4
    %v530 = vadd.f32 %v528, %v529
    %v531 = vrot.slane %v530, 2
    %v532 = vadd.f32 %v530, %v531
    %v533 = vrot.slane %v532, 1
    %v534 = vadd.f32 %v532, %v533
    %vm535 = vcmask 0
    %536 = vst.msk [vmem:[#allocation5] sm:$0x1] %vm535, %v534
  $region29: #{multitask_loss.1} parent=0 // pred_fallthru
    _
  %v537 = vld [vmem:[%s0] sm:$0xf]
  %v538 = vld [vmem:[%s0 + $0x4] sm:$0xf]
  %v539 = vld [vmem:[%s0 + $0x8] sm:$0xf]
  %v540 = vld [vmem:[%s0 + $0xc] sm:$0xf]
  %v541 = vld [vmem:[%s0 + $0x10] sm:$0xf]
  %v542 = vld [vmem:[%s0 + $0x14] sm:$0xf]
  %v543 = vld [vmem:[%s0 + $0x18] sm:$0xf]
  %v544 = vld [vmem:[%s0 + $0x1c] sm:$0xf]
  %v545 = vld [vmem:[%s0 + $0x20] sm:$0xf]
  %v546 = vld [vmem:[%s0 + $0x24] sm:$0xf]
  %v547 = vld [vmem:[%s0 + $0x28] sm:$0xf]
  %v548 = vld [vmem:[%s0 + $0x2c] sm:$0xf]
  %v549 = vld [vmem:[%s0 + $0x30] sm:$0xf]
  %v550 = vld [vmem:[%s0 + $0x34] sm:$0xf]
  %v551 = vld [vmem:[%s0 + $0x38] sm:$0xf]
  %v552 = vld [vmem:[%s0 + $0x3c] sm:$0xf]
  %v553 = vld [vmem:[%s1] sm:$0xf]
  %v554 = vld [vmem:[%s1 + $0x4] sm:$0xf]
  %v555 = vld [vmem:[%s1 + $0x8] sm:$0xf]
  %v556 = vld [vmem:[%s1 + $0xc] sm:$0xf]
  %v557 = vld [vmem:[%s1 + $0x10] sm:$0xf]
  %v558 = vld [vmem:[%s1 + $0x14] sm:$0xf]
  %v559 = vld [vmem:[%s1 + $0x18] sm:$0xf]
  %v560 = vld [vmem:[%s1 + $0x1c] sm:$0xf]
  %v561 = vld [vmem:[%s1 + $0x20] sm:$0xf]
  %v562 = vld [vmem:[%s1 + $0x24] sm:$0xf]
  %v563 = vld [vmem:[%s1 + $0x28] sm:$0xf]
  %v564 = vld [vmem:[%s1 + $0x2c] sm:$0xf]
  %v565 = vld [vmem:[%s1 + $0x30] sm:$0xf]
  %v566 = vld [vmem:[%s1 + $0x34] sm:$0xf]
  %v567 = vld [vmem:[%s1 + $0x38] sm:$0xf]
  %v568 = vld [vmem:[%s1 + $0x3c] sm:$0xf]
  %v585 = vunpack.c.l.b16 %v537
  %v586 = vunpack.c.l.b16 %v538
  %v587 = vunpack.c.l.b16 %v539
  %v588 = vunpack.c.l.b16 %v540
  %v589 = vunpack.c.l.b16 %v541
  %v590 = vunpack.c.l.b16 %v542
  %v591 = vunpack.c.l.b16 %v543
  %v592 = vunpack.c.l.b16 %v544
  %v593 = vunpack.c.l.b16 %v545
  %v594 = vunpack.c.l.b16 %v546
  %v595 = vunpack.c.l.b16 %v547
  %v596 = vunpack.c.l.b16 %v548
  %v597 = vunpack.c.l.b16 %v549
  %v598 = vunpack.c.l.b16 %v550
  %v599 = vunpack.c.l.b16 %v551
  %v600 = vunpack.c.l.b16 %v552
  %v601 = vpack.c.b16 %v586, %v585
  %v602 = vpack.c.b16 %v588, %v587
  %v603 = vpack.c.b16 %v590, %v589
  %v604 = vpack.c.b16 %v592, %v591
  %v605 = vpack.c.b16 %v594, %v593
  %v606 = vpack.c.b16 %v596, %v595
  %v607 = vpack.c.b16 %v598, %v597
  %v608 = vpack.c.b16 %v600, %v599
  %v633 = vunpack.c.l.b16 %v553
  %v634 = vunpack.c.l.b16 %v554
  %v635 = vunpack.c.l.b16 %v555
  %v636 = vunpack.c.l.b16 %v556
  %v637 = vunpack.c.l.b16 %v557
  %v638 = vunpack.c.l.b16 %v558
  %v639 = vunpack.c.l.b16 %v559
  %v640 = vunpack.c.l.b16 %v560
  %v641 = vunpack.c.l.b16 %v561
  %v642 = vunpack.c.l.b16 %v562
  %v643 = vunpack.c.l.b16 %v563
  %v644 = vunpack.c.l.b16 %v564
  %v645 = vunpack.c.l.b16 %v565
  %v646 = vunpack.c.l.b16 %v566
  %v647 = vunpack.c.l.b16 %v567
  %v648 = vunpack.c.l.b16 %v568
  %v649 = vpack.c.b16 %v634, %v633
  %v650 = vpack.c.b16 %v636, %v635
  %v651 = vpack.c.b16 %v638, %v637
  %v652 = vpack.c.b16 %v640, %v639
  %v653 = vpack.c.b16 %v642, %v641
  %v654 = vpack.c.b16 %v644, %v643
  %v655 = vpack.c.b16 %v646, %v645
  %v656 = vpack.c.b16 %v648, %v647
  %665 = vmatprep.subr.bf16.mxu0 0
  %666 = vmatpush1.bf16.xpose.msra.mxu0 %v656
  %667 = vmatprep.subr.bf16.mxu0 0
  %668 = vmatpush1.bf16.xpose.msra.mxu0 %v655
  %669 = vmatprep.subr.bf16.mxu0 0
  %670 = vmatpush1.bf16.xpose.msra.mxu0 %v654
  %671 = vmatprep.subr.bf16.mxu0 0
  %672 = vmatpush1.bf16.xpose.msra.mxu0 %v653
  %673 = vmatprep.subr.bf16.mxu0 0
  %674 = vmatpush1.bf16.xpose.msra.mxu0 %v652
  %675 = vmatprep.subr.bf16.mxu0 0
  %676 = vmatpush1.bf16.xpose.msra.mxu0 %v651
  %677 = vmatprep.subr.bf16.mxu0 0
  %678 = vmatpush1.bf16.xpose.msra.mxu0 %v650
  %679 = vmatprep.subr.bf16.mxu0 0
  %680 = vmatpush1.bf16.xpose.msra.mxu0 %v649
  %681 = vmatprep.subr.bf16.mxu0 0
  %682 = vmatpush2.bf16.xpose.msra.mxu0 0
  %683 = vmatprep.subr.bf16.mxu0 0
  %684 = vmatpush2.bf16.xpose.msra.mxu0 0
  %685 = vmatprep.subr.bf16.mxu0 0
  %686 = vmatpush2.bf16.xpose.msra.mxu0 0
  %687 = vmatprep.subr.bf16.mxu0 0
  %688 = vmatpush2.bf16.xpose.msra.mxu0 0
  %689 = vmatprep.subr.bf16.mxu0 0
  %690 = vmatpush2.bf16.xpose.msra.mxu0 0
  %691 = vmatprep.subr.bf16.mxu0 0
  %692 = vmatpush2.bf16.xpose.msra.mxu0 0
  %693 = vmatprep.subr.bf16.mxu0 0
  %694 = vmatpush2.bf16.xpose.msra.mxu0 0
  %695 = vmatprep.subr.bf16.mxu0 0
  %696 = vmatpush2.bf16.xpose.msra.mxu0 0
  %697 = vmatprep.mubr.bf16.mxu0 0
  %698 = vmatmul.mubr.bf16.gmra.mxu0 %v601
  %v699 = vpop.f32.mrf.mxu0
  %v700 = vadd.f32 0.0, %v699
  %v701 = vpop.f32.mrf.mxu0
  %v702 = vpop.f32.mrf.mxu0
  %v703 = vadd.f32 0.0, %v702
  %v704 = vpop.f32.mrf.mxu0
  %705 = vmatprep.mubr.bf16.mxu0 0
  %706 = vmatmul.mubr.bf16.gmra.mxu0 %v602
  %v707 = vpop.f32.mrf.mxu0
  %v708 = vadd.f32 0.0, %v707
  %v709 = vpop.f32.mrf.mxu0
  %v710 = vpop.f32.mrf.mxu0
  %v711 = vadd.f32 0.0, %v710
  %v712 = vpop.f32.mrf.mxu0
  %713 = vmatprep.mubr.bf16.mxu0 0
  %714 = vmatmul.mubr.bf16.gmra.mxu0 %v603
  %v715 = vpop.f32.mrf.mxu0
  %v716 = vadd.f32 0.0, %v715
  %v717 = vpop.f32.mrf.mxu0
  %v718 = vpop.f32.mrf.mxu0
  %v719 = vadd.f32 0.0, %v718
  %v720 = vpop.f32.mrf.mxu0
  %721 = vmatprep.mubr.bf16.mxu0 0
  %722 = vmatmul.mubr.bf16.gmra.mxu0 %v604
  %v723 = vpop.f32.mrf.mxu0
  %v724 = vadd.f32 0.0, %v723
  %v725 = vpop.f32.mrf.mxu0
  %v726 = vpop.f32.mrf.mxu0
  %v727 = vadd.f32 0.0, %v726
  %v728 = vpop.f32.mrf.mxu0
  %729 = vmatprep.mubr.bf16.mxu0 0
  %730 = vmatmul.mubr.bf16.gmra.mxu0 %v605
  %v731 = vpop.f32.mrf.mxu0
  %v732 = vadd.f32 0.0, %v731
  %v733 = vpop.f32.mrf.mxu0
  %v734 = vpop.f32.mrf.mxu0
  %v735 = vadd.f32 0.0, %v734
  %v736 = vpop.f32.mrf.mxu0
  %737 = vmatprep.mubr.bf16.mxu0 0
  %738 = vmatmul.mubr.bf16.gmra.mxu0 %v606
  %v739 = vpop.f32.mrf.mxu0
  %v740 = vadd.f32 0.0, %v739
  %v741 = vpop.f32.mrf.mxu0
  %v742 = vpop.f32.mrf.mxu0
  %v743 = vadd.f32 0.0, %v742
  %v744 = vpop.f32.mrf.mxu0
  %745 = vmatprep.mubr.bf16.mxu0 0
  %746 = vmatmul.mubr.bf16.gmra.mxu0 %v607
  %v747 = vpop.f32.mrf.mxu0
  %v748 = vadd.f32 0.0, %v747
  %v749 = vpop.f32.mrf.mxu0
  %v750 = vpop.f32.mrf.mxu0
  %v751 = vadd.f32 0.0, %v750
  %v752 = vpop.f32.mrf.mxu0
  %753 = vmatprep.mubr.bf16.mxu0 0
  %754 = vmatmul.mubr.bf16.gmra.mxu0 %v608
  %v755 = vpop.f32.mrf.mxu0
  %v756 = vadd.f32 0.0, %v755
  %v757 = vpop.f32.mrf.mxu0
  %v758 = vpop.f32.mrf.mxu0
  %v759 = vadd.f32 0.0, %v758
  %v760 = vpop.f32.mrf.mxu0
  %761 = vdwg.mxu0
  %v762 = vld [vmem:[%s3] sm:$0xff]
  %v763 = vld [vmem:[%s3 + $0x8] sm:$0xff]
  %v764 = vld [vmem:[%s3 + $0x10] sm:$0xff]
  %v765 = vld [vmem:[%s3 + $0x18] sm:$0xff]
  %v766 = vld [vmem:[%s3 + $0x20] sm:$0xff]
  %v767 = vld [vmem:[%s3 + $0x28] sm:$0xff]
  %v768 = vld [vmem:[%s3 + $0x30] sm:$0xff]
  %v769 = vld [vmem:[%s3 + $0x38] sm:$0xff]
  %v770 = vld [vmem:[%s3 + $0x40] sm:$0xff]
  %v771 = vld [vmem:[%s3 + $0x48] sm:$0xff]
  %v772 = vld [vmem:[%s3 + $0x50] sm:$0xff]
  %v773 = vld [vmem:[%s3 + $0x58] sm:$0xff]
  %v774 = vld [vmem:[%s3 + $0x60] sm:$0xff]
  %v775 = vld [vmem:[%s3 + $0x68] sm:$0xff]
  %v776 = vld [vmem:[%s3 + $0x70] sm:$0xff]
  %v777 = vld [vmem:[%s3 + $0x78] sm:$0xff]
  %v778 = vld [vmem:[%s4] sm:$0x1]
  %779 = vset.pattern.permute.xlu0 0
  %780 = vperm.xlu0 %779, %v762
  %v781 = vpop.permute.xlu0 %780
  %782 = vset.pattern.permute.xlu0 0
  %783 = vperm.xlu0 %782, %v763
  %v784 = vpop.permute.xlu0 %783
  %785 = vset.pattern.permute.xlu0 0
  %786 = vperm.xlu0 %785, %v764
  %v787 = vpop.permute.xlu0 %786
  %788 = vset.pattern.permute.xlu0 0
  %789 = vperm.xlu0 %788, %v765
  %v790 = vpop.permute.xlu0 %789
  %791 = vset.pattern.permute.xlu0 0
  %792 = vperm.xlu0 %791, %v766
  %v793 = vpop.permute.xlu0 %792
  %794 = vset.pattern.permute.xlu0 0
  %795 = vperm.xlu0 %794, %v767
  %v796 = vpop.permute.xlu0 %795
  %797 = vset.pattern.permute.xlu0 0
  %798 = vperm.xlu0 %797, %v768
  %v799 = vpop.permute.xlu0 %798
  %800 = vset.pattern.permute.xlu0 0
  %801 = vperm.xlu0 %800, %v769
  %v802 = vpop.permute.xlu0 %801
  %803 = vset.pattern.permute.xlu0 0
  %804 = vperm.xlu0 %803, %v770
  %v805 = vpop.permute.xlu0 %804
  %806 = vset.pattern.permute.xlu0 0
  %807 = vperm.xlu0 %806, %v771
  %v808 = vpop.permute.xlu0 %807
  %809 = vset.pattern.permute.xlu0 0
  %810 = vperm.xlu0 %809, %v772
  %v811 = vpop.permute.xlu0 %810
  %812 = vset.pattern.permute.xlu0 0
  %813 = vperm.xlu0 %812, %v773
  %v814 = vpop.permute.xlu0 %813
  %815 = vset.pattern.permute.xlu0 0
  %816 = vperm.xlu0 %815, %v774
  %v817 = vpop.permute.xlu0 %816
  %818 = vset.pattern.permute.xlu0 0
  %819 = vperm.xlu0 %818, %v775
  %v820 = vpop.permute.xlu0 %819
  %821 = vset.pattern.permute.xlu0 0
  %822 = vperm.xlu0 %821, %v776
  %v823 = vpop.permute.xlu0 %822
  %824 = vset.pattern.permute.xlu0 0
  %825 = vperm.xlu0 %824, %v777
  %v826 = vpop.permute.xlu0 %825
  %v827 = vlaneseq
  %v828 = vshrl.u32 %v827, 7
  %v829 = vsub.s32 0, %v828
  %v830 = vrot.slane %v778, %v829
  %vm831 = vcmp.eq.s32.totalorder %v781, %v830
  %vm832 = vcmp.eq.s32.totalorder %v784, %v830
  %vm833 = vcmp.eq.s32.totalorder %v787, %v830
  %vm834 = vcmp.eq.s32.totalorder %v790, %v830
  %vm835 = vcmp.eq.s32.totalorder %v793, %v830
  %vm836 = vcmp.eq.s32.totalorder %v796, %v830
  %vm837 = vcmp.eq.s32.totalorder %v799, %v830
  %vm838 = vcmp.eq.s32.totalorder %v802, %v830
  %vm839 = vcmp.eq.s32.totalorder %v805, %v830
  %vm840 = vcmp.eq.s32.totalorder %v808, %v830
  %vm841 = vcmp.eq.s32.totalorder %v811, %v830
  %vm842 = vcmp.eq.s32.totalorder %v814, %v830
  %vm843 = vcmp.eq.s32.totalorder %v817, %v830
  %vm844 = vcmp.eq.s32.totalorder %v820, %v830
  %vm845 = vcmp.eq.s32.totalorder %v823, %v830
  %vm846 = vcmp.eq.s32.totalorder %v826, %v830
  %847 = vmax.xlane.f32.xlu0 %v700
  %v848 = vpop.xlane.xlu0 %847
  %849 = vmax.xlane.f32.xlu0 %v703
  %v850 = vpop.xlane.xlu0 %849
  %851 = vmax.xlane.f32.xlu0 %v708
  %v852 = vpop.xlane.xlu0 %851
  %853 = vmax.xlane.f32.xlu0 %v711
  %v854 = vpop.xlane.xlu0 %853
  %855 = vmax.xlane.f32.xlu0 %v716
  %v856 = vpop.xlane.xlu0 %855
  %857 = vmax.xlane.f32.xlu0 %v719
  %v858 = vpop.xlane.xlu0 %857
  %859 = vmax.xlane.f32.xlu0 %v724
  %v860 = vpop.xlane.xlu0 %859
  %861 = vmax.xlane.f32.xlu0 %v727
  %v862 = vpop.xlane.xlu0 %861
  %863 = vmax.xlane.f32.xlu0 %v732
  %v864 = vpop.xlane.xlu0 %863
  %865 = vmax.xlane.f32.xlu0 %v735
  %v866 = vpop.xlane.xlu0 %865
  %867 = vmax.xlane.f32.xlu0 %v740
  %v868 = vpop.xlane.xlu0 %867
  %869 = vmax.xlane.f32.xlu0 %v743
  %v870 = vpop.xlane.xlu0 %869
  %871 = vmax.xlane.f32.xlu0 %v748
  %v872 = vpop.xlane.xlu0 %871
  %873 = vmax.xlane.f32.xlu0 %v751
  %v874 = vpop.xlane.xlu0 %873
  %875 = vmax.xlane.f32.xlu0 %v756
  %v876 = vpop.xlane.xlu0 %875
  %877 = vmax.xlane.f32.xlu0 %v759
  %v878 = vpop.xlane.xlu0 %877
  %v879 = vld [vmem:[#allocation2] sm:$0xff]
  %v880 = vld [vmem:[#allocation2 + $0x8] sm:$0xff]
  %v881 = vld [vmem:[#allocation2 + $0x10] sm:$0xff]
  %v882 = vld [vmem:[#allocation2 + $0x18] sm:$0xff]
  %v883 = vld [vmem:[#allocation2 + $0x20] sm:$0xff]
  %v884 = vld [vmem:[#allocation2 + $0x28] sm:$0xff]
  %v885 = vld [vmem:[#allocation2 + $0x30] sm:$0xff]
  %v886 = vld [vmem:[#allocation2 + $0x38] sm:$0xff]
  %v887 = vld [vmem:[#allocation2 + $0x40] sm:$0xff]
  %v888 = vld [vmem:[#allocation2 + $0x48] sm:$0xff]
  %v889 = vld [vmem:[#allocation2 + $0x50] sm:$0xff]
  %v890 = vld [vmem:[#allocation2 + $0x58] sm:$0xff]
  %v891 = vld [vmem:[#allocation2 + $0x60] sm:$0xff]
  %v892 = vld [vmem:[#allocation2 + $0x68] sm:$0xff]
  %v893 = vld [vmem:[#allocation2 + $0x70] sm:$0xff]
  %v894 = vld [vmem:[#allocation2 + $0x78] sm:$0xff]
  %v895 = vmax.f32 %v879, %v848
  %v896 = vmax.f32 %v880, %v850
  %v897 = vmax.f32 %v881, %v852
  %v898 = vmax.f32 %v882, %v854
  %v899 = vmax.f32 %v883, %v856
  %v900 = vmax.f32 %v884, %v858
  %v901 = vmax.f32 %v885, %v860
  %v902 = vmax.f32 %v886, %v862
  %v903 = vmax.f32 %v887, %v864
  %v904 = vmax.f32 %v888, %v866
  %v905 = vmax.f32 %v889, %v868
  %v906 = vmax.f32 %v890, %v870
  %v907 = vmax.f32 %v891, %v872
  %v908 = vmax.f32 %v892, %v874
  %v909 = vmax.f32 %v893, %v876
  %v910 = vmax.f32 %v894, %v878
  %v911 = vsub.f32 %v879, %v895
  %v912 = vsub.f32 %v880, %v896
  %v913 = vsub.f32 %v881, %v897
  %v914 = vsub.f32 %v882, %v898
  %v915 = vsub.f32 %v883, %v899
  %v916 = vsub.f32 %v884, %v900
  %v917 = vsub.f32 %v885, %v901
  %v918 = vsub.f32 %v886, %v902
  %v919 = vsub.f32 %v887, %v903
  %v920 = vsub.f32 %v888, %v904
  %v921 = vsub.f32 %v889, %v905
  %v922 = vsub.f32 %v890, %v906
  %v923 = vsub.f32 %v891, %v907
  %v924 = vsub.f32 %v892, %v908
  %v925 = vsub.f32 %v893, %v909
  %v926 = vsub.f32 %v894, %v910
  %v927 = vmul.f32 %v911, 1.442695
  %v928 = vpow.pop %v927
  %v929 = vmul.f32 %v912, 1.442695
  %v930 = vpow.pop %v929
  %v931 = vmul.f32 %v913, 1.442695
  %v932 = vpow.pop %v931
  %v933 = vmul.f32 %v914, 1.442695
  %v934 = vpow.pop %v933
  %v935 = vmul.f32 %v915, 1.442695
  %v936 = vpow.pop %v935
  %v937 = vmul.f32 %v916, 1.442695
  %v938 = vpow.pop %v937
  %v939 = vmul.f32 %v917, 1.442695
  %v940 = vpow.pop %v939
  %v941 = vmul.f32 %v918, 1.442695
  %v942 = vpow.pop %v941
  %v943 = vmul.f32 %v919, 1.442695
  %v944 = vpow.pop %v943
  %v945 = vmul.f32 %v920, 1.442695
  %v946 = vpow.pop %v945
  %v947 = vmul.f32 %v921, 1.442695
  %v948 = vpow.pop %v947
  %v949 = vmul.f32 %v922, 1.442695
  %v950 = vpow.pop %v949
  %v951 = vmul.f32 %v923, 1.442695
  %v952 = vpow.pop %v951
  %v953 = vmul.f32 %v924, 1.442695
  %v954 = vpow.pop %v953
  %v955 = vmul.f32 %v925, 1.442695
  %v956 = vpow.pop %v955
  %v957 = vmul.f32 %v926, 1.442695
  %v958 = vpow.pop %v957
  %960 = vset.pattern.permute.xlu0 0
  %961 = vperm.xlu0 %960, %v895
  %v962 = vpop.permute.xlu0 %961
  %965 = vset.pattern.permute.xlu0 0
  %966 = vperm.xlu0 %965, %v896
  %v967 = vpop.permute.xlu0 %966
  %970 = vset.pattern.permute.xlu0 0
  %971 = vperm.xlu0 %970, %v897
  %v972 = vpop.permute.xlu0 %971
  %975 = vset.pattern.permute.xlu0 0
  %976 = vperm.xlu0 %975, %v898
  %v977 = vpop.permute.xlu0 %976
  %980 = vset.pattern.permute.xlu0 0
  %981 = vperm.xlu0 %980, %v899
  %v982 = vpop.permute.xlu0 %981
  %985 = vset.pattern.permute.xlu0 0
  %986 = vperm.xlu0 %985, %v900
  %v987 = vpop.permute.xlu0 %986
  %990 = vset.pattern.permute.xlu0 0
  %991 = vperm.xlu0 %990, %v901
  %v992 = vpop.permute.xlu0 %991
  %995 = vset.pattern.permute.xlu0 0
  %996 = vperm.xlu0 %995, %v902
  %v997 = vpop.permute.xlu0 %996
  %1000 = vset.pattern.permute.xlu0 0
  %1001 = vperm.xlu0 %1000, %v903
  %v1002 = vpop.permute.xlu0 %1001
  %1005 = vset.pattern.permute.xlu0 0
  %1006 = vperm.xlu0 %1005, %v904
  %v1007 = vpop.permute.xlu0 %1006
  %1010 = vset.pattern.permute.xlu0 0
  %1011 = vperm.xlu0 %1010, %v905
  %v1012 = vpop.permute.xlu0 %1011
  %1015 = vset.pattern.permute.xlu0 0
  %1016 = vperm.xlu0 %1015, %v906
  %v1017 = vpop.permute.xlu0 %1016
  %1020 = vset.pattern.permute.xlu0 0
  %1021 = vperm.xlu0 %1020, %v907
  %v1022 = vpop.permute.xlu0 %1021
  %1025 = vset.pattern.permute.xlu0 0
  %1026 = vperm.xlu0 %1025, %v908
  %v1027 = vpop.permute.xlu0 %1026
  %1030 = vset.pattern.permute.xlu0 0
  %1031 = vperm.xlu0 %1030, %v909
  %v1032 = vpop.permute.xlu0 %1031
  %1035 = vset.pattern.permute.xlu0 0
  %1036 = vperm.xlu0 %1035, %v910
  %v1037 = vpop.permute.xlu0 %1036
  %v1039 = vsub.f32 %v700, %v962
  %v1040 = vsub.f32 %v703, %v967
  %v1041 = vsub.f32 %v708, %v972
  %v1042 = vsub.f32 %v711, %v977
  %v1043 = vsub.f32 %v716, %v982
  %v1044 = vsub.f32 %v719, %v987
  %v1045 = vsub.f32 %v724, %v992
  %v1046 = vsub.f32 %v727, %v997
  %v1047 = vsub.f32 %v732, %v1002
  %v1048 = vsub.f32 %v735, %v1007
  %v1049 = vsub.f32 %v740, %v1012
  %v1050 = vsub.f32 %v743, %v1017
  %v1051 = vsub.f32 %v748, %v1022
  %v1052 = vsub.f32 %v751, %v1027
  %v1053 = vsub.f32 %v756, %v1032
  %v1054 = vsub.f32 %v759, %v1037
  %v1055 = vmul.f32 %v1039, 1.442695
  %v1056 = vpow.pop %v1055
  %v1057 = vmul.f32 %v1040, 1.442695
  %v1058 = vpow.pop %v1057
  %v1059 = vmul.f32 %v1041, 1.442695
  %v1060 = vpow.pop %v1059
  %v1061 = vmul.f32 %v1042, 1.442695
  %v1062 = vpow.pop %v1061
  %v1063 = vmul.f32 %v1043, 1.442695
  %v1064 = vpow.pop %v1063
  %v1065 = vmul.f32 %v1044, 1.442695
  %v1066 = vpow.pop %v1065
  %v1067 = vmul.f32 %v1045, 1.442695
  %v1068 = vpow.pop %v1067
  %v1069 = vmul.f32 %v1046, 1.442695
  %v1070 = vpow.pop %v1069
  %v1071 = vmul.f32 %v1047, 1.442695
  %v1072 = vpow.pop %v1071
  %v1073 = vmul.f32 %v1048, 1.442695
  %v1074 = vpow.pop %v1073
  %v1075 = vmul.f32 %v1049, 1.442695
  %v1076 = vpow.pop %v1075
  %v1077 = vmul.f32 %v1050, 1.442695
  %v1078 = vpow.pop %v1077
  %v1079 = vmul.f32 %v1051, 1.442695
  %v1080 = vpow.pop %v1079
  %v1081 = vmul.f32 %v1052, 1.442695
  %v1082 = vpow.pop %v1081
  %v1083 = vmul.f32 %v1053, 1.442695
  %v1084 = vpow.pop %v1083
  %v1085 = vmul.f32 %v1054, 1.442695
  %v1086 = vpow.pop %v1085
  %vm1087 = vcmask 7168
  %1088 = vst.msk [vmem:[#allocation2] sm:$0xff] %vm1087, %v895
  %1089 = vst.msk [vmem:[#allocation2 + $0x8] sm:$0xff] %vm1087, %v896
  %1090 = vst.msk [vmem:[#allocation2 + $0x10] sm:$0xff] %vm1087, %v897
  %1091 = vst.msk [vmem:[#allocation2 + $0x18] sm:$0xff] %vm1087, %v898
  %1092 = vst.msk [vmem:[#allocation2 + $0x20] sm:$0xff] %vm1087, %v899
  %1093 = vst.msk [vmem:[#allocation2 + $0x28] sm:$0xff] %vm1087, %v900
  %1094 = vst.msk [vmem:[#allocation2 + $0x30] sm:$0xff] %vm1087, %v901
  %1095 = vst.msk [vmem:[#allocation2 + $0x38] sm:$0xff] %vm1087, %v902
  %1096 = vst.msk [vmem:[#allocation2 + $0x40] sm:$0xff] %vm1087, %v903
  %1097 = vst.msk [vmem:[#allocation2 + $0x48] sm:$0xff] %vm1087, %v904
  %1098 = vst.msk [vmem:[#allocation2 + $0x50] sm:$0xff] %vm1087, %v905
  %1099 = vst.msk [vmem:[#allocation2 + $0x58] sm:$0xff] %vm1087, %v906
  %1100 = vst.msk [vmem:[#allocation2 + $0x60] sm:$0xff] %vm1087, %v907
  %1101 = vst.msk [vmem:[#allocation2 + $0x68] sm:$0xff] %vm1087, %v908
  %1102 = vst.msk [vmem:[#allocation2 + $0x70] sm:$0xff] %vm1087, %v909
  %1103 = vst.msk [vmem:[#allocation2 + $0x78] sm:$0xff] %vm1087, %v910
  %s1104 = smul.u32 0, 128
  %s1105 = smul.u32 0, 128
  %s1106 = sadd.s32 %s1105, 128
  %p1107 = scmp.lt.s32.totalorder %s1104, %s1106
  %s1108 = sadd.s32 %s1104, 128
  %p1109 = scmp.lt.s32.totalorder %s1105, %s1108
  %p1110 = pnand %p1107, %p1109
  %p1111 = pneg %p1110
  %p1112 = por %p1111, %p24
  // Predicated region
  $region30: #{multitask_loss.1} parent=0 // pred_check
    %p1113 = pneg %p1112
  $region31: #{multitask_loss.1} parent=0 // pred_check_branch
    %1115 = sbr.rel (%p1113) target = $region33
  $region32: #{multitask_loss.1} parent=0 // pred_region
    %v1116 = vlaneseq
    %v1117 = vshrl.u32 %v1116, 7
    %v1118 = vadd.s32 %v1117, 8
    %v1119 = vadd.s32 %v1117, 16
    %v1120 = vadd.s32 %v1117, 24
    %v1121 = vadd.s32 %v1117, 32
    %v1122 = vadd.s32 %v1117, 40
    %v1123 = vadd.s32 %v1117, 48
    %v1124 = vadd.s32 %v1117, 56
    %v1125 = vadd.s32 %v1117, 64
    %v1126 = vadd.s32 %v1117, 72
    %v1127 = vadd.s32 %v1117, 80
    %v1128 = vadd.s32 %v1117, 88
    %v1129 = vadd.s32 %v1117, 96
    %v1130 = vadd.s32 %v1117, 104
    %v1131 = vadd.s32 %v1117, 112
    %v1132 = vadd.s32 %v1117, 120
    %v1133 = vstv %s1104
    %v1134 = vadd.s32 %v1133, %v1117
    %v1135 = vadd.s32 %v1133, %v1118
    %v1136 = vadd.s32 %v1133, %v1119
    %v1137 = vadd.s32 %v1133, %v1120
    %v1138 = vadd.s32 %v1133, %v1121
    %v1139 = vadd.s32 %v1133, %v1122
    %v1140 = vadd.s32 %v1133, %v1123
    %v1141 = vadd.s32 %v1133, %v1124
    %v1142 = vadd.s32 %v1133, %v1125
    %v1143 = vadd.s32 %v1133, %v1126
    %v1144 = vadd.s32 %v1133, %v1127
    %v1145 = vadd.s32 %v1133, %v1128
    %v1146 = vadd.s32 %v1133, %v1129
    %v1147 = vadd.s32 %v1133, %v1130
    %v1148 = vadd.s32 %v1133, %v1131
    %v1149 = vadd.s32 %v1133, %v1132
    %v1150 = vlaneseq
    %v1151 = vand.u32 %v1150, 127
    %v1152 = vstv %s1105
    %v1153 = vadd.s32 %v1152, %v1151
    %vm1154 = vcmp.ne.s32.totalorder %v1134, %v1153
    %vm1155 = vcmp.ne.s32.totalorder %v1135, %v1153
    %vm1156 = vcmp.ne.s32.totalorder %v1136, %v1153
    %vm1157 = vcmp.ne.s32.totalorder %v1137, %v1153
    %vm1158 = vcmp.ne.s32.totalorder %v1138, %v1153
    %vm1159 = vcmp.ne.s32.totalorder %v1139, %v1153
    %vm1160 = vcmp.ne.s32.totalorder %v1140, %v1153
    %vm1161 = vcmp.ne.s32.totalorder %v1141, %v1153
    %vm1162 = vcmp.ne.s32.totalorder %v1142, %v1153
    %vm1163 = vcmp.ne.s32.totalorder %v1143, %v1153
    %vm1164 = vcmp.ne.s32.totalorder %v1144, %v1153
    %vm1165 = vcmp.ne.s32.totalorder %v1145, %v1153
    %vm1166 = vcmp.ne.s32.totalorder %v1146, %v1153
    %vm1167 = vcmp.ne.s32.totalorder %v1147, %v1153
    %vm1168 = vcmp.ne.s32.totalorder %v1148, %v1153
    %vm1169 = vcmp.ne.s32.totalorder %v1149, %v1153
    %vm1170 = vcmp.lt.s32.totalorder %v1153, 16
    %vm1171 = vmand %vm1170, %vm1154
    %vm1172 = vmand %vm1170, %vm1155
    %vm1173 = vmand %vm1170, %vm1156
    %vm1174 = vmand %vm1170, %vm1157
    %vm1175 = vmand %vm1170, %vm1158
    %vm1176 = vmand %vm1170, %vm1159
    %vm1177 = vmand %vm1170, %vm1160
    %vm1178 = vmand %vm1170, %vm1161
    %vm1179 = vmand %vm1170, %vm1162
    %vm1180 = vmand %vm1170, %vm1163
    %vm1181 = vmand %vm1170, %vm1164
    %vm1182 = vmand %vm1170, %vm1165
    %vm1183 = vmand %vm1170, %vm1166
    %vm1184 = vmand %vm1170, %vm1167
    %vm1185 = vmand %vm1170, %vm1168
    %vm1186 = vmand %vm1170, %vm1169
    %v1187 = vld [vmem:[#allocation3] sm:$0xff]
    %v1188 = vld [vmem:[#allocation3 + $0x8] sm:$0xff]
    %v1189 = vld [vmem:[#allocation3 + $0x10] sm:$0xff]
    %v1190 = vld [vmem:[#allocation3 + $0x18] sm:$0xff]
    %v1191 = vld [vmem:[#allocation3 + $0x20] sm:$0xff]
    %v1192 = vld [vmem:[#allocation3 + $0x28] sm:$0xff]
    %v1193 = vld [vmem:[#allocation3 + $0x30] sm:$0xff]
    %v1194 = vld [vmem:[#allocation3 + $0x38] sm:$0xff]
    %v1195 = vld [vmem:[#allocation3 + $0x40] sm:$0xff]
    %v1196 = vld [vmem:[#allocation3 + $0x48] sm:$0xff]
    %v1197 = vld [vmem:[#allocation3 + $0x50] sm:$0xff]
    %v1198 = vld [vmem:[#allocation3 + $0x58] sm:$0xff]
    %v1199 = vld [vmem:[#allocation3 + $0x60] sm:$0xff]
    %v1200 = vld [vmem:[#allocation3 + $0x68] sm:$0xff]
    %v1201 = vld [vmem:[#allocation3 + $0x70] sm:$0xff]
    %v1202 = vld [vmem:[#allocation3 + $0x78] sm:$0xff]
    %v1203 = vmul.f32 %v1187, %v928
    %v1204 = vmul.f32 %v1188, %v930
    %v1205 = vmul.f32 %v1189, %v932
    %v1206 = vmul.f32 %v1190, %v934
    %v1207 = vmul.f32 %v1191, %v936
    %v1208 = vmul.f32 %v1192, %v938
    %v1209 = vmul.f32 %v1193, %v940
    %v1210 = vmul.f32 %v1194, %v942
    %v1211 = vmul.f32 %v1195, %v944
    %v1212 = vmul.f32 %v1196, %v946
    %v1213 = vmul.f32 %v1197, %v948
    %v1214 = vmul.f32 %v1198, %v950
    %v1215 = vmul.f32 %v1199, %v952
    %v1216 = vmul.f32 %v1200, %v954
    %v1217 = vmul.f32 %v1201, %v956
    %v1218 = vmul.f32 %v1202, %v958
    %v1219 = vsel %vm1171, %v1056, 0.0
    %v1220 = vsel %vm1172, %v1058, 0.0
    %v1221 = vsel %vm1173, %v1060, 0.0
    %v1222 = vsel %vm1174, %v1062, 0.0
    %v1223 = vsel %vm1175, %v1064, 0.0
    %v1224 = vsel %vm1176, %v1066, 0.0
    %v1225 = vsel %vm1177, %v1068, 0.0
    %v1226 = vsel %vm1178, %v1070, 0.0
    %v1227 = vsel %vm1179, %v1072, 0.0
    %v1228 = vsel %vm1180, %v1074, 0.0
    %v1229 = vsel %vm1181, %v1076, 0.0
    %v1230 = vsel %vm1182, %v1078, 0.0
    %v1231 = vsel %vm1183, %v1080, 0.0
    %v1232 = vsel %vm1184, %v1082, 0.0
    %v1233 = vsel %vm1185, %v1084, 0.0
    %v1234 = vsel %vm1186, %v1086, 0.0
    %1235 = vadd.xlane.f32.xlu0 %v1219
    %v1236 = vpop.xlane.xlu0 %1235
    %1237 = vadd.xlane.f32.xlu0 %v1220
    %v1238 = vpop.xlane.xlu0 %1237
    %1239 = vadd.xlane.f32.xlu0 %v1221
    %v1240 = vpop.xlane.xlu0 %1239
    %1241 = vadd.xlane.f32.xlu0 %v1222
    %v1242 = vpop.xlane.xlu0 %1241
    %1243 = vadd.xlane.f32.xlu0 %v1223
    %v1244 = vpop.xlane.xlu0 %1243
    %1245 = vadd.xlane.f32.xlu0 %v1224
    %v1246 = vpop.xlane.xlu0 %1245
    %1247 = vadd.xlane.f32.xlu0 %v1225
    %v1248 = vpop.xlane.xlu0 %1247
    %1249 = vadd.xlane.f32.xlu0 %v1226
    %v1250 = vpop.xlane.xlu0 %1249
    %1251 = vadd.xlane.f32.xlu0 %v1227
    %v1252 = vpop.xlane.xlu0 %1251
    %1253 = vadd.xlane.f32.xlu0 %v1228
    %v1254 = vpop.xlane.xlu0 %1253
    %1255 = vadd.xlane.f32.xlu0 %v1229
    %v1256 = vpop.xlane.xlu0 %1255
    %1257 = vadd.xlane.f32.xlu0 %v1230
    %v1258 = vpop.xlane.xlu0 %1257
    %1259 = vadd.xlane.f32.xlu0 %v1231
    %v1260 = vpop.xlane.xlu0 %1259
    %1261 = vadd.xlane.f32.xlu0 %v1232
    %v1262 = vpop.xlane.xlu0 %1261
    %1263 = vadd.xlane.f32.xlu0 %v1233
    %v1264 = vpop.xlane.xlu0 %1263
    %1265 = vadd.xlane.f32.xlu0 %v1234
    %v1266 = vpop.xlane.xlu0 %1265
    %v1267 = vadd.f32 %v1203, %v1236
    %v1268 = vadd.f32 %v1204, %v1238
    %v1269 = vadd.f32 %v1205, %v1240
    %v1270 = vadd.f32 %v1206, %v1242
    %v1271 = vadd.f32 %v1207, %v1244
    %v1272 = vadd.f32 %v1208, %v1246
    %v1273 = vadd.f32 %v1209, %v1248
    %v1274 = vadd.f32 %v1210, %v1250
    %v1275 = vadd.f32 %v1211, %v1252
    %v1276 = vadd.f32 %v1212, %v1254
    %v1277 = vadd.f32 %v1213, %v1256
    %v1278 = vadd.f32 %v1214, %v1258
    %v1279 = vadd.f32 %v1215, %v1260
    %v1280 = vadd.f32 %v1216, %v1262
    %v1281 = vadd.f32 %v1217, %v1264
    %v1282 = vadd.f32 %v1218, %v1266
    %1283 = vst.msk [vmem:[#allocation3] sm:$0xff] %vm1087, %v1267
    %1284 = vst.msk [vmem:[#allocation3 + $0x8] sm:$0xff] %vm1087, %v1268
    %1285 = vst.msk [vmem:[#allocation3 + $0x10] sm:$0xff] %vm1087, %v1269
    %1286 = vst.msk [vmem:[#allocation3 + $0x18] sm:$0xff] %vm1087, %v1270
    %1287 = vst.msk [vmem:[#allocation3 + $0x20] sm:$0xff] %vm1087, %v1271
    %1288 = vst.msk [vmem:[#allocation3 + $0x28] sm:$0xff] %vm1087, %v1272
    %1289 = vst.msk [vmem:[#allocation3 + $0x30] sm:$0xff] %vm1087, %v1273
    %1290 = vst.msk [vmem:[#allocation3 + $0x38] sm:$0xff] %vm1087, %v1274
    %1291 = vst.msk [vmem:[#allocation3 + $0x40] sm:$0xff] %vm1087, %v1275
    %1292 = vst.msk [vmem:[#allocation3 + $0x48] sm:$0xff] %vm1087, %v1276
    %1293 = vst.msk [vmem:[#allocation3 + $0x50] sm:$0xff] %vm1087, %v1277
    %1294 = vst.msk [vmem:[#allocation3 + $0x58] sm:$0xff] %vm1087, %v1278
    %1295 = vst.msk [vmem:[#allocation3 + $0x60] sm:$0xff] %vm1087, %v1279
    %1296 = vst.msk [vmem:[#allocation3 + $0x68] sm:$0xff] %vm1087, %v1280
    %1297 = vst.msk [vmem:[#allocation3 + $0x70] sm:$0xff] %vm1087, %v1281
    %1298 = vst.msk [vmem:[#allocation3 + $0x78] sm:$0xff] %vm1087, %v1282
    %v1299 = vld [vmem:[#allocation4] sm:$0xff]
    %v1300 = vld [vmem:[#allocation4 + $0x8] sm:$0xff]
    %v1301 = vld [vmem:[#allocation4 + $0x10] sm:$0xff]
    %v1302 = vld [vmem:[#allocation4 + $0x18] sm:$0xff]
    %v1303 = vld [vmem:[#allocation4 + $0x20] sm:$0xff]
    %v1304 = vld [vmem:[#allocation4 + $0x28] sm:$0xff]
    %v1305 = vld [vmem:[#allocation4 + $0x30] sm:$0xff]
    %v1306 = vld [vmem:[#allocation4 + $0x38] sm:$0xff]
    %v1307 = vld [vmem:[#allocation4 + $0x40] sm:$0xff]
    %v1308 = vld [vmem:[#allocation4 + $0x48] sm:$0xff]
    %v1309 = vld [vmem:[#allocation4 + $0x50] sm:$0xff]
    %v1310 = vld [vmem:[#allocation4 + $0x58] sm:$0xff]
    %v1311 = vld [vmem:[#allocation4 + $0x60] sm:$0xff]
    %v1312 = vld [vmem:[#allocation4 + $0x68] sm:$0xff]
    %v1313 = vld [vmem:[#allocation4 + $0x70] sm:$0xff]
    %v1314 = vld [vmem:[#allocation4 + $0x78] sm:$0xff]
    %vm1315 = vmand %vm831, %vm1154
    %vm1316 = vmand %vm832, %vm1155
    %vm1317 = vmand %vm833, %vm1156
    %vm1318 = vmand %vm834, %vm1157
    %vm1319 = vmand %vm835, %vm1158
    %vm1320 = vmand %vm836, %vm1159
    %vm1321 = vmand %vm837, %vm1160
    %vm1322 = vmand %vm838, %vm1161
    %vm1323 = vmand %vm839, %vm1162
    %vm1324 = vmand %vm840, %vm1163
    %vm1325 = vmand %vm841, %vm1164
    %vm1326 = vmand %vm842, %vm1165
    %vm1327 = vmand %vm843, %vm1166
    %vm1328 = vmand %vm844, %vm1167
    %vm1329 = vmand %vm845, %vm1168
    %vm1330 = vmand %vm846, %vm1169
    %v1331 = vsel %vm1315, %v700, 0.0
    %v1332 = vsel %vm1316, %v703, 0.0
    %v1333 = vsel %vm1317, %v708, 0.0
    %v1334 = vsel %vm1318, %v711, 0.0
    %v1335 = vsel %vm1319, %v716, 0.0
    %v1336 = vsel %vm1320, %v719, 0.0
    %v1337 = vsel %vm1321, %v724, 0.0
    %v1338 = vsel %vm1322, %v727, 0.0
    %v1339 = vsel %vm1323, %v732, 0.0
    %v1340 = vsel %vm1324, %v735, 0.0
    %v1341 = vsel %vm1325, %v740, 0.0
    %v1342 = vsel %vm1326, %v743, 0.0
    %v1343 = vsel %vm1327, %v748, 0.0
    %v1344 = vsel %vm1328, %v751, 0.0
    %v1345 = vsel %vm1329, %v756, 0.0
    %v1346 = vsel %vm1330, %v759, 0.0
    %1347 = vadd.xlane.f32.xlu0 %v1331
    %v1348 = vpop.xlane.xlu0 %1347
    %1349 = vadd.xlane.f32.xlu0 %v1332
    %v1350 = vpop.xlane.xlu0 %1349
    %1351 = vadd.xlane.f32.xlu0 %v1333
    %v1352 = vpop.xlane.xlu0 %1351
    %1353 = vadd.xlane.f32.xlu0 %v1334
    %v1354 = vpop.xlane.xlu0 %1353
    %1355 = vadd.xlane.f32.xlu0 %v1335
    %v1356 = vpop.xlane.xlu0 %1355
    %1357 = vadd.xlane.f32.xlu0 %v1336
    %v1358 = vpop.xlane.xlu0 %1357
    %1359 = vadd.xlane.f32.xlu0 %v1337
    %v1360 = vpop.xlane.xlu0 %1359
    %1361 = vadd.xlane.f32.xlu0 %v1338
    %v1362 = vpop.xlane.xlu0 %1361
    %1363 = vadd.xlane.f32.xlu0 %v1339
    %v1364 = vpop.xlane.xlu0 %1363
    %1365 = vadd.xlane.f32.xlu0 %v1340
    %v1366 = vpop.xlane.xlu0 %1365
    %1367 = vadd.xlane.f32.xlu0 %v1341
    %v1368 = vpop.xlane.xlu0 %1367
    %1369 = vadd.xlane.f32.xlu0 %v1342
    %v1370 = vpop.xlane.xlu0 %1369
    %1371 = vadd.xlane.f32.xlu0 %v1343
    %v1372 = vpop.xlane.xlu0 %1371
    %1373 = vadd.xlane.f32.xlu0 %v1344
    %v1374 = vpop.xlane.xlu0 %1373
    %1375 = vadd.xlane.f32.xlu0 %v1345
    %v1376 = vpop.xlane.xlu0 %1375
    %1377 = vadd.xlane.f32.xlu0 %v1346
    %v1378 = vpop.xlane.xlu0 %1377
    %v1379 = vadd.f32 %v1299, %v1348
    %v1380 = vadd.f32 %v1300, %v1350
    %v1381 = vadd.f32 %v1301, %v1352
    %v1382 = vadd.f32 %v1302, %v1354
    %v1383 = vadd.f32 %v1303, %v1356
    %v1384 = vadd.f32 %v1304, %v1358
    %v1385 = vadd.f32 %v1305, %v1360
    %v1386 = vadd.f32 %v1306, %v1362
    %v1387 = vadd.f32 %v1307, %v1364
    %v1388 = vadd.f32 %v1308, %v1366
    %v1389 = vadd.f32 %v1309, %v1368
    %v1390 = vadd.f32 %v1310, %v1370
    %v1391 = vadd.f32 %v1311, %v1372
    %v1392 = vadd.f32 %v1312, %v1374
    %v1393 = vadd.f32 %v1313, %v1376
    %v1394 = vadd.f32 %v1314, %v1378
    %1395 = vst.msk [vmem:[#allocation4] sm:$0xff] %vm1087, %v1379
    %1396 = vst.msk [vmem:[#allocation4 + $0x8] sm:$0xff] %vm1087, %v1380
    %1397 = vst.msk [vmem:[#allocation4 + $0x10] sm:$0xff] %vm1087, %v1381
    %1398 = vst.msk [vmem:[#allocation4 + $0x18] sm:$0xff] %vm1087, %v1382
    %1399 = vst.msk [vmem:[#allocation4 + $0x20] sm:$0xff] %vm1087, %v1383
    %1400 = vst.msk [vmem:[#allocation4 + $0x28] sm:$0xff] %vm1087, %v1384
    %1401 = vst.msk [vmem:[#allocation4 + $0x30] sm:$0xff] %vm1087, %v1385
    %1402 = vst.msk [vmem:[#allocation4 + $0x38] sm:$0xff] %vm1087, %v1386
    %1403 = vst.msk [vmem:[#allocation4 + $0x40] sm:$0xff] %vm1087, %v1387
    %1404 = vst.msk [vmem:[#allocation4 + $0x48] sm:$0xff] %vm1087, %v1388
    %1405 = vst.msk [vmem:[#allocation4 + $0x50] sm:$0xff] %vm1087, %v1389
    %1406 = vst.msk [vmem:[#allocation4 + $0x58] sm:$0xff] %vm1087, %v1390
    %1407 = vst.msk [vmem:[#allocation4 + $0x60] sm:$0xff] %vm1087, %v1391
    %1408 = vst.msk [vmem:[#allocation4 + $0x68] sm:$0xff] %vm1087, %v1392
    %1409 = vst.msk [vmem:[#allocation4 + $0x70] sm:$0xff] %vm1087, %v1393
    %1410 = vst.msk [vmem:[#allocation4 + $0x78] sm:$0xff] %vm1087, %v1394
  $region33: #{multitask_loss.1} parent=0 // pred_fallthru
    _
  %p1411 = pneg %p1112
  // Predicated region
  $region34: #{multitask_loss.1} parent=0 // pred_check
    _
  $region35: #{multitask_loss.1} parent=0 // pred_check_branch
    %1413 = sbr.rel (%p1112) target = $region37
  $region36: #{multitask_loss.1} parent=0 // pred_region
    %v1414 = vld [vmem:[#allocation3] sm:$0xff]
    %v1415 = vld [vmem:[#allocation3 + $0x8] sm:$0xff]
    %v1416 = vld [vmem:[#allocation3 + $0x10] sm:$0xff]
    %v1417 = vld [vmem:[#allocation3 + $0x18] sm:$0xff]
    %v1418 = vld [vmem:[#allocation3 + $0x20] sm:$0xff]
    %v1419 = vld [vmem:[#allocation3 + $0x28] sm:$0xff]
    %v1420 = vld [vmem:[#allocation3 + $0x30] sm:$0xff]
    %v1421 = vld [vmem:[#allocation3 + $0x38] sm:$0xff]
    %v1422 = vld [vmem:[#allocation3 + $0x40] sm:$0xff]
    %v1423 = vld [vmem:[#allocation3 + $0x48] sm:$0xff]
    %v1424 = vld [vmem:[#allocation3 + $0x50] sm:$0xff]
    %v1425 = vld [vmem:[#allocation3 + $0x58] sm:$0xff]
    %v1426 = vld [vmem:[#allocation3 + $0x60] sm:$0xff]
    %v1427 = vld [vmem:[#allocation3 + $0x68] sm:$0xff]
    %v1428 = vld [vmem:[#allocation3 + $0x70] sm:$0xff]
    %v1429 = vld [vmem:[#allocation3 + $0x78] sm:$0xff]
    %v1430 = vmul.f32 %v1414, %v928
    %v1431 = vmul.f32 %v1415, %v930
    %v1432 = vmul.f32 %v1416, %v932
    %v1433 = vmul.f32 %v1417, %v934
    %v1434 = vmul.f32 %v1418, %v936
    %v1435 = vmul.f32 %v1419, %v938
    %v1436 = vmul.f32 %v1420, %v940
    %v1437 = vmul.f32 %v1421, %v942
    %v1438 = vmul.f32 %v1422, %v944
    %v1439 = vmul.f32 %v1423, %v946
    %v1440 = vmul.f32 %v1424, %v948
    %v1441 = vmul.f32 %v1425, %v950
    %v1442 = vmul.f32 %v1426, %v952
    %v1443 = vmul.f32 %v1427, %v954
    %v1444 = vmul.f32 %v1428, %v956
    %v1445 = vmul.f32 %v1429, %v958
    %1446 = vadd.xlane.f32.xlu0 %v1056
    %v1447 = vpop.xlane.xlu0 %1446
    %1448 = vadd.xlane.f32.xlu0 %v1058
    %v1449 = vpop.xlane.xlu0 %1448
    %1450 = vadd.xlane.f32.xlu0 %v1060
    %v1451 = vpop.xlane.xlu0 %1450
    %1452 = vadd.xlane.f32.xlu0 %v1062
    %v1453 = vpop.xlane.xlu0 %1452
    %1454 = vadd.xlane.f32.xlu0 %v1064
    %v1455 = vpop.xlane.xlu0 %1454
    %1456 = vadd.xlane.f32.xlu0 %v1066
    %v1457 = vpop.xlane.xlu0 %1456
    %1458 = vadd.xlane.f32.xlu0 %v1068
    %v1459 = vpop.xlane.xlu0 %1458
    %1460 = vadd.xlane.f32.xlu0 %v1070
    %v1461 = vpop.xlane.xlu0 %1460
    %1462 = vadd.xlane.f32.xlu0 %v1072
    %v1463 = vpop.xlane.xlu0 %1462
    %1464 = vadd.xlane.f32.xlu0 %v1074
    %v1465 = vpop.xlane.xlu0 %1464
    %1466 = vadd.xlane.f32.xlu0 %v1076
    %v1467 = vpop.xlane.xlu0 %1466
    %1468 = vadd.xlane.f32.xlu0 %v1078
    %v1469 = vpop.xlane.xlu0 %1468
    %1470 = vadd.xlane.f32.xlu0 %v1080
    %v1471 = vpop.xlane.xlu0 %1470
    %1472 = vadd.xlane.f32.xlu0 %v1082
    %v1473 = vpop.xlane.xlu0 %1472
    %1474 = vadd.xlane.f32.xlu0 %v1084
    %v1475 = vpop.xlane.xlu0 %1474
    %1476 = vadd.xlane.f32.xlu0 %v1086
    %v1477 = vpop.xlane.xlu0 %1476
    %v1478 = vadd.f32 %v1430, %v1447
    %v1479 = vadd.f32 %v1431, %v1449
    %v1480 = vadd.f32 %v1432, %v1451
    %v1481 = vadd.f32 %v1433, %v1453
    %v1482 = vadd.f32 %v1434, %v1455
    %v1483 = vadd.f32 %v1435, %v1457
    %v1484 = vadd.f32 %v1436, %v1459
    %v1485 = vadd.f32 %v1437, %v1461
    %v1486 = vadd.f32 %v1438, %v1463
    %v1487 = vadd.f32 %v1439, %v1465
    %v1488 = vadd.f32 %v1440, %v1467
    %v1489 = vadd.f32 %v1441, %v1469
    %v1490 = vadd.f32 %v1442, %v1471
    %v1491 = vadd.f32 %v1443, %v1473
    %v1492 = vadd.f32 %v1444, %v1475
    %v1493 = vadd.f32 %v1445, %v1477
    %1494 = vst.msk [vmem:[#allocation3] sm:$0xff] %vm1087, %v1478
    %1495 = vst.msk [vmem:[#allocation3 + $0x8] sm:$0xff] %vm1087, %v1479
    %1496 = vst.msk [vmem:[#allocation3 + $0x10] sm:$0xff] %vm1087, %v1480
    %1497 = vst.msk [vmem:[#allocation3 + $0x18] sm:$0xff] %vm1087, %v1481
    %1498 = vst.msk [vmem:[#allocation3 + $0x20] sm:$0xff] %vm1087, %v1482
    %1499 = vst.msk [vmem:[#allocation3 + $0x28] sm:$0xff] %vm1087, %v1483
    %1500 = vst.msk [vmem:[#allocation3 + $0x30] sm:$0xff] %vm1087, %v1484
    %1501 = vst.msk [vmem:[#allocation3 + $0x38] sm:$0xff] %vm1087, %v1485
    %1502 = vst.msk [vmem:[#allocation3 + $0x40] sm:$0xff] %vm1087, %v1486
    %1503 = vst.msk [vmem:[#allocation3 + $0x48] sm:$0xff] %vm1087, %v1487
    %1504 = vst.msk [vmem:[#allocation3 + $0x50] sm:$0xff] %vm1087, %v1488
    %1505 = vst.msk [vmem:[#allocation3 + $0x58] sm:$0xff] %vm1087, %v1489
    %1506 = vst.msk [vmem:[#allocation3 + $0x60] sm:$0xff] %vm1087, %v1490
    %1507 = vst.msk [vmem:[#allocation3 + $0x68] sm:$0xff] %vm1087, %v1491
    %1508 = vst.msk [vmem:[#allocation3 + $0x70] sm:$0xff] %vm1087, %v1492
    %1509 = vst.msk [vmem:[#allocation3 + $0x78] sm:$0xff] %vm1087, %v1493
    %v1510 = vld [vmem:[#allocation4] sm:$0xff]
    %v1511 = vld [vmem:[#allocation4 + $0x8] sm:$0xff]
    %v1512 = vld [vmem:[#allocation4 + $0x10] sm:$0xff]
    %v1513 = vld [vmem:[#allocation4 + $0x18] sm:$0xff]
    %v1514 = vld [vmem:[#allocation4 + $0x20] sm:$0xff]
    %v1515 = vld [vmem:[#allocation4 + $0x28] sm:$0xff]
    %v1516 = vld [vmem:[#allocation4 + $0x30] sm:$0xff]
    %v1517 = vld [vmem:[#allocation4 + $0x38] sm:$0xff]
    %v1518 = vld [vmem:[#allocation4 + $0x40] sm:$0xff]
    %v1519 = vld [vmem:[#allocation4 + $0x48] sm:$0xff]
    %v1520 = vld [vmem:[#allocation4 + $0x50] sm:$0xff]
    %v1521 = vld [vmem:[#allocation4 + $0x58] sm:$0xff]
    %v1522 = vld [vmem:[#allocation4 + $0x60] sm:$0xff]
    %v1523 = vld [vmem:[#allocation4 + $0x68] sm:$0xff]
    %v1524 = vld [vmem:[#allocation4 + $0x70] sm:$0xff]
    %v1525 = vld [vmem:[#allocation4 + $0x78] sm:$0xff]
    %v1526 = vsel %vm831, %v700, 0.0
    %v1527 = vsel %vm832, %v703, 0.0
    %v1528 = vsel %vm833, %v708, 0.0
    %v1529 = vsel %vm834, %v711, 0.0
    %v1530 = vsel %vm835, %v716, 0.0
    %v1531 = vsel %vm836, %v719, 0.0
    %v1532 = vsel %vm837, %v724, 0.0
    %v1533 = vsel %vm838, %v727, 0.0
    %v1534 = vsel %vm839, %v732, 0.0
    %v1535 = vsel %vm840, %v735, 0.0
    %v1536 = vsel %vm841, %v740, 0.0
    %v1537 = vsel %vm842, %v743, 0.0
    %v1538 = vsel %vm843, %v748, 0.0
    %v1539 = vsel %vm844, %v751, 0.0
    %v1540 = vsel %vm845, %v756, 0.0
    %v1541 = vsel %vm846, %v759, 0.0
    %1542 = vadd.xlane.f32.xlu0 %v1526
    %v1543 = vpop.xlane.xlu0 %1542
    %1544 = vadd.xlane.f32.xlu0 %v1527
    %v1545 = vpop.xlane.xlu0 %1544
    %1546 = vadd.xlane.f32.xlu0 %v1528
    %v1547 = vpop.xlane.xlu0 %1546
    %1548 = vadd.xlane.f32.xlu0 %v1529
    %v1549 = vpop.xlane.xlu0 %1548
    %1550 = vadd.xlane.f32.xlu0 %v1530
    %v1551 = vpop.xlane.xlu0 %1550
    %1552 = vadd.xlane.f32.xlu0 %v1531
    %v1553 = vpop.xlane.xlu0 %1552
    %1554 = vadd.xlane.f32.xlu0 %v1532
    %v1555 = vpop.xlane.xlu0 %1554
    %1556 = vadd.xlane.f32.xlu0 %v1533
    %v1557 = vpop.xlane.xlu0 %1556
    %1558 = vadd.xlane.f32.xlu0 %v1534
    %v1559 = vpop.xlane.xlu0 %1558
    %1560 = vadd.xlane.f32.xlu0 %v1535
    %v1561 = vpop.xlane.xlu0 %1560
    %1562 = vadd.xlane.f32.xlu0 %v1536
    %v1563 = vpop.xlane.xlu0 %1562
    %1564 = vadd.xlane.f32.xlu0 %v1537
    %v1565 = vpop.xlane.xlu0 %1564
    %1566 = vadd.xlane.f32.xlu0 %v1538
    %v1567 = vpop.xlane.xlu0 %1566
    %1568 = vadd.xlane.f32.xlu0 %v1539
    %v1569 = vpop.xlane.xlu0 %1568
    %1570 = vadd.xlane.f32.xlu0 %v1540
    %v1571 = vpop.xlane.xlu0 %1570
    %1572 = vadd.xlane.f32.xlu0 %v1541
    %v1573 = vpop.xlane.xlu0 %1572
    %v1574 = vadd.f32 %v1510, %v1543
    %v1575 = vadd.f32 %v1511, %v1545
    %v1576 = vadd.f32 %v1512, %v1547
    %v1577 = vadd.f32 %v1513, %v1549
    %v1578 = vadd.f32 %v1514, %v1551
    %v1579 = vadd.f32 %v1515, %v1553
    %v1580 = vadd.f32 %v1516, %v1555
    %v1581 = vadd.f32 %v1517, %v1557
    %v1582 = vadd.f32 %v1518, %v1559
    %v1583 = vadd.f32 %v1519, %v1561
    %v1584 = vadd.f32 %v1520, %v1563
    %v1585 = vadd.f32 %v1521, %v1565
    %v1586 = vadd.f32 %v1522, %v1567
    %v1587 = vadd.f32 %v1523, %v1569
    %v1588 = vadd.f32 %v1524, %v1571
    %v1589 = vadd.f32 %v1525, %v1573
    %1590 = vst.msk [vmem:[#allocation4] sm:$0xff] %vm1087, %v1574
    %1591 = vst.msk [vmem:[#allocation4 + $0x8] sm:$0xff] %vm1087, %v1575
    %1592 = vst.msk [vmem:[#allocation4 + $0x10] sm:$0xff] %vm1087, %v1576
    %1593 = vst.msk [vmem:[#allocation4 + $0x18] sm:$0xff] %vm1087, %v1577
    %1594 = vst.msk [vmem:[#allocation4 + $0x20] sm:$0xff] %vm1087, %v1578
    %1595 = vst.msk [vmem:[#allocation4 + $0x28] sm:$0xff] %vm1087, %v1579
    %1596 = vst.msk [vmem:[#allocation4 + $0x30] sm:$0xff] %vm1087, %v1580
    %1597 = vst.msk [vmem:[#allocation4 + $0x38] sm:$0xff] %vm1087, %v1581
    %1598 = vst.msk [vmem:[#allocation4 + $0x40] sm:$0xff] %vm1087, %v1582
    %1599 = vst.msk [vmem:[#allocation4 + $0x48] sm:$0xff] %vm1087, %v1583
    %1600 = vst.msk [vmem:[#allocation4 + $0x50] sm:$0xff] %vm1087, %v1584
    %1601 = vst.msk [vmem:[#allocation4 + $0x58] sm:$0xff] %vm1087, %v1585
    %1602 = vst.msk [vmem:[#allocation4 + $0x60] sm:$0xff] %vm1087, %v1586
    %1603 = vst.msk [vmem:[#allocation4 + $0x68] sm:$0xff] %vm1087, %v1587
    %1604 = vst.msk [vmem:[#allocation4 + $0x70] sm:$0xff] %vm1087, %v1588
    %1605 = vst.msk [vmem:[#allocation4 + $0x78] sm:$0xff] %vm1087, %v1589
  $region37: #{multitask_loss.1} parent=0 // pred_fallthru
    _
  // Predicated region
  $region38: #{multitask_loss.1} parent=0 // pred_check
    %p1606 = pneg %p24
  $region39: #{multitask_loss.1} parent=0 // pred_check_branch
    %1608 = sbr.rel (%p1606) target = $region41
  $region40: #{multitask_loss.1} parent=0 // pred_region
    %v1609 = vlaneseq
    %v1610 = vshrl.u32 %v1609, 7
    %v1611 = vadd.s32 %v1610, 8
    %v1612 = vadd.s32 %v1610, 16
    %v1613 = vadd.s32 %v1610, 24
    %v1614 = vadd.s32 %v1610, 32
    %v1615 = vadd.s32 %v1610, 40
    %v1616 = vadd.s32 %v1610, 48
    %v1617 = vadd.s32 %v1610, 56
    %v1618 = vadd.s32 %v1610, 64
    %v1619 = vadd.s32 %v1610, 72
    %v1620 = vadd.s32 %v1610, 80
    %v1621 = vadd.s32 %v1610, 88
    %v1622 = vadd.s32 %v1610, 96
    %v1623 = vadd.s32 %v1610, 104
    %v1624 = vadd.s32 %v1610, 112
    %v1625 = vadd.s32 %v1610, 120
    %v1626 = vstv %s1104
    %v1627 = vadd.s32 %v1626, %v1610
    %v1628 = vadd.s32 %v1626, %v1611
    %v1629 = vadd.s32 %v1626, %v1612
    %v1630 = vadd.s32 %v1626, %v1613
    %v1631 = vadd.s32 %v1626, %v1614
    %v1632 = vadd.s32 %v1626, %v1615
    %v1633 = vadd.s32 %v1626, %v1616
    %v1634 = vadd.s32 %v1626, %v1617
    %v1635 = vadd.s32 %v1626, %v1618
    %v1636 = vadd.s32 %v1626, %v1619
    %v1637 = vadd.s32 %v1626, %v1620
    %v1638 = vadd.s32 %v1626, %v1621
    %v1639 = vadd.s32 %v1626, %v1622
    %v1640 = vadd.s32 %v1626, %v1623
    %v1641 = vadd.s32 %v1626, %v1624
    %v1642 = vadd.s32 %v1626, %v1625
    %vm1643 = vcmp.lt.s32.totalorder %v1627, 16
    %vm1644 = vcmp.lt.s32.totalorder %v1628, 16
    %vm1645 = vcmp.lt.s32.totalorder %v1629, 16
    %vm1646 = vcmp.lt.s32.totalorder %v1630, 16
    %vm1647 = vcmp.lt.s32.totalorder %v1631, 16
    %vm1648 = vcmp.lt.s32.totalorder %v1632, 16
    %vm1649 = vcmp.lt.s32.totalorder %v1633, 16
    %vm1650 = vcmp.lt.s32.totalorder %v1634, 16
    %vm1651 = vcmp.lt.s32.totalorder %v1635, 16
    %vm1652 = vcmp.lt.s32.totalorder %v1636, 16
    %vm1653 = vcmp.lt.s32.totalorder %v1637, 16
    %vm1654 = vcmp.lt.s32.totalorder %v1638, 16
    %vm1655 = vcmp.lt.s32.totalorder %v1639, 16
    %vm1656 = vcmp.lt.s32.totalorder %v1640, 16
    %vm1657 = vcmp.lt.s32.totalorder %v1641, 16
    %vm1658 = vcmp.lt.s32.totalorder %v1642, 16
    %v1659 = vsel %vm1643, 1, 0
    %v1660 = vsel %vm1644, 1, 0
    %v1661 = vsel %vm1645, 1, 0
    %v1662 = vsel %vm1646, 1, 0
    %v1663 = vsel %vm1647, 1, 0
    %v1664 = vsel %vm1648, 1, 0
    %v1665 = vsel %vm1649, 1, 0
    %v1666 = vsel %vm1650, 1, 0
    %v1667 = vsel %vm1651, 1, 0
    %v1668 = vsel %vm1652, 1, 0
    %v1669 = vsel %vm1653, 1, 0
    %v1670 = vsel %vm1654, 1, 0
    %v1671 = vsel %vm1655, 1, 0
    %v1672 = vsel %vm1656, 1, 0
    %v1673 = vsel %vm1657, 1, 0
    %v1674 = vsel %vm1658, 1, 0
    %v1675 = vcvt.s32.f32 %v1659
    %v1676 = vcvt.s32.f32 %v1660
    %v1677 = vcvt.s32.f32 %v1661
    %v1678 = vcvt.s32.f32 %v1662
    %v1679 = vcvt.s32.f32 %v1663
    %v1680 = vcvt.s32.f32 %v1664
    %v1681 = vcvt.s32.f32 %v1665
    %v1682 = vcvt.s32.f32 %v1666
    %v1683 = vcvt.s32.f32 %v1667
    %v1684 = vcvt.s32.f32 %v1668
    %v1685 = vcvt.s32.f32 %v1669
    %v1686 = vcvt.s32.f32 %v1670
    %v1687 = vcvt.s32.f32 %v1671
    %v1688 = vcvt.s32.f32 %v1672
    %v1689 = vcvt.s32.f32 %v1673
    %v1690 = vcvt.s32.f32 %v1674
    %v1691 = vld [vmem:[#allocation4] sm:$0xff]
    %v1692 = vld [vmem:[#allocation4 + $0x8] sm:$0xff]
    %v1693 = vld [vmem:[#allocation4 + $0x10] sm:$0xff]
    %v1694 = vld [vmem:[#allocation4 + $0x18] sm:$0xff]
    %v1695 = vld [vmem:[#allocation4 + $0x20] sm:$0xff]
    %v1696 = vld [vmem:[#allocation4 + $0x28] sm:$0xff]
    %v1697 = vld [vmem:[#allocation4 + $0x30] sm:$0xff]
    %v1698 = vld [vmem:[#allocation4 + $0x38] sm:$0xff]
    %v1699 = vld [vmem:[#allocation4 + $0x40] sm:$0xff]
    %v1700 = vld [vmem:[#allocation4 + $0x48] sm:$0xff]
    %v1701 = vld [vmem:[#allocation4 + $0x50] sm:$0xff]
    %v1702 = vld [vmem:[#allocation4 + $0x58] sm:$0xff]
    %v1703 = vld [vmem:[#allocation4 + $0x60] sm:$0xff]
    %v1704 = vld [vmem:[#allocation4 + $0x68] sm:$0xff]
    %v1705 = vld [vmem:[#allocation4 + $0x70] sm:$0xff]
    %v1706 = vld [vmem:[#allocation4 + $0x78] sm:$0xff]
    %v1707 = vld [vmem:[%s5] sm:$0xff]
    %v1708 = vld [vmem:[%s5 + $0x8] sm:$0xff]
    %v1709 = vld [vmem:[%s5 + $0x10] sm:$0xff]
    %v1710 = vld [vmem:[%s5 + $0x18] sm:$0xff]
    %v1711 = vld [vmem:[%s5 + $0x20] sm:$0xff]
    %v1712 = vld [vmem:[%s5 + $0x28] sm:$0xff]
    %v1713 = vld [vmem:[%s5 + $0x30] sm:$0xff]
    %v1714 = vld [vmem:[%s5 + $0x38] sm:$0xff]
    %v1715 = vld [vmem:[%s5 + $0x40] sm:$0xff]
    %v1716 = vld [vmem:[%s5 + $0x48] sm:$0xff]
    %v1717 = vld [vmem:[%s5 + $0x50] sm:$0xff]
    %v1718 = vld [vmem:[%s5 + $0x58] sm:$0xff]
    %v1719 = vld [vmem:[%s5 + $0x60] sm:$0xff]
    %v1720 = vld [vmem:[%s5 + $0x68] sm:$0xff]
    %v1721 = vld [vmem:[%s5 + $0x70] sm:$0xff]
    %v1722 = vld [vmem:[%s5 + $0x78] sm:$0xff]
    %v1723 = vrcp.pop %v1707
    %v1724 = vmul.f32 %v1691, %v1723
    %v1725 = vrcp.pop %v1708
    %v1726 = vmul.f32 %v1692, %v1725
    %v1727 = vrcp.pop %v1709
    %v1728 = vmul.f32 %v1693, %v1727
    %v1729 = vrcp.pop %v1710
    %v1730 = vmul.f32 %v1694, %v1729
    %v1731 = vrcp.pop %v1711
    %v1732 = vmul.f32 %v1695, %v1731
    %v1733 = vrcp.pop %v1712
    %v1734 = vmul.f32 %v1696, %v1733
    %v1735 = vrcp.pop %v1713
    %v1736 = vmul.f32 %v1697, %v1735
    %v1737 = vrcp.pop %v1714
    %v1738 = vmul.f32 %v1698, %v1737
    %v1739 = vrcp.pop %v1715
    %v1740 = vmul.f32 %v1699, %v1739
    %v1741 = vrcp.pop %v1716
    %v1742 = vmul.f32 %v1700, %v1741
    %v1743 = vrcp.pop %v1717
    %v1744 = vmul.f32 %v1701, %v1743
    %v1745 = vrcp.pop %v1718
    %v1746 = vmul.f32 %v1702, %v1745
    %v1747 = vrcp.pop %v1719
    %v1748 = vmul.f32 %v1703, %v1747
    %v1749 = vrcp.pop %v1720
    %v1750 = vmul.f32 %v1704, %v1749
    %v1751 = vrcp.pop %v1721
    %v1752 = vmul.f32 %v1705, %v1751
    %v1753 = vrcp.pop %v1722
    %v1754 = vmul.f32 %v1706, %v1753
    %v1755 = vld [vmem:[#allocation3] sm:$0xff]
    %v1756 = vld [vmem:[#allocation3 + $0x8] sm:$0xff]
    %v1757 = vld [vmem:[#allocation3 + $0x10] sm:$0xff]
    %v1758 = vld [vmem:[#allocation3 + $0x18] sm:$0xff]
    %v1759 = vld [vmem:[#allocation3 + $0x20] sm:$0xff]
    %v1760 = vld [vmem:[#allocation3 + $0x28] sm:$0xff]
    %v1761 = vld [vmem:[#allocation3 + $0x30] sm:$0xff]
    %v1762 = vld [vmem:[#allocation3 + $0x38] sm:$0xff]
    %v1763 = vld [vmem:[#allocation3 + $0x40] sm:$0xff]
    %v1764 = vld [vmem:[#allocation3 + $0x48] sm:$0xff]
    %v1765 = vld [vmem:[#allocation3 + $0x50] sm:$0xff]
    %v1766 = vld [vmem:[#allocation3 + $0x58] sm:$0xff]
    %v1767 = vld [vmem:[#allocation3 + $0x60] sm:$0xff]
    %v1768 = vld [vmem:[#allocation3 + $0x68] sm:$0xff]
    %v1769 = vld [vmem:[#allocation3 + $0x70] sm:$0xff]
    %v1770 = vld [vmem:[#allocation3 + $0x78] sm:$0xff]
    %v1771 = vlog2.pop %v1755
    %v1772 = vmul.f32 %v1771, 0.6931472
    %v1773 = vlog2.pop %v1756
    %v1774 = vmul.f32 %v1773, 0.6931472
    %v1775 = vlog2.pop %v1757
    %v1776 = vmul.f32 %v1775, 0.6931472
    %v1777 = vlog2.pop %v1758
    %v1778 = vmul.f32 %v1777, 0.6931472
    %v1779 = vlog2.pop %v1759
    %v1780 = vmul.f32 %v1779, 0.6931472
    %v1781 = vlog2.pop %v1760
    %v1782 = vmul.f32 %v1781, 0.6931472
    %v1783 = vlog2.pop %v1761
    %v1784 = vmul.f32 %v1783, 0.6931472
    %v1785 = vlog2.pop %v1762
    %v1786 = vmul.f32 %v1785, 0.6931472
    %v1787 = vlog2.pop %v1763
    %v1788 = vmul.f32 %v1787, 0.6931472
    %v1789 = vlog2.pop %v1764
    %v1790 = vmul.f32 %v1789, 0.6931472
    %v1791 = vlog2.pop %v1765
    %v1792 = vmul.f32 %v1791, 0.6931472
    %v1793 = vlog2.pop %v1766
    %v1794 = vmul.f32 %v1793, 0.6931472
    %v1795 = vlog2.pop %v1767
    %v1796 = vmul.f32 %v1795, 0.6931472
    %v1797 = vlog2.pop %v1768
    %v1798 = vmul.f32 %v1797, 0.6931472
    %v1799 = vlog2.pop %v1769
    %v1800 = vmul.f32 %v1799, 0.6931472
    %v1801 = vlog2.pop %v1770
    %v1802 = vmul.f32 %v1801, 0.6931472
    %v1803 = vld [vmem:[#allocation2] sm:$0xff]
    %v1804 = vld [vmem:[#allocation2 + $0x8] sm:$0xff]
    %v1805 = vld [vmem:[#allocation2 + $0x10] sm:$0xff]
    %v1806 = vld [vmem:[#allocation2 + $0x18] sm:$0xff]
    %v1807 = vld [vmem:[#allocation2 + $0x20] sm:$0xff]
    %v1808 = vld [vmem:[#allocation2 + $0x28] sm:$0xff]
    %v1809 = vld [vmem:[#allocation2 + $0x30] sm:$0xff]
    %v1810 = vld [vmem:[#allocation2 + $0x38] sm:$0xff]
    %v1811 = vld [vmem:[#allocation2 + $0x40] sm:$0xff]
    %v1812 = vld [vmem:[#allocation2 + $0x48] sm:$0xff]
    %v1813 = vld [vmem:[#allocation2 + $0x50] sm:$0xff]
    %v1814 = vld [vmem:[#allocation2 + $0x58] sm:$0xff]
    %v1815 = vld [vmem:[#allocation2 + $0x60] sm:$0xff]
    %v1816 = vld [vmem:[#allocation2 + $0x68] sm:$0xff]
    %v1817 = vld [vmem:[#allocation2 + $0x70] sm:$0xff]
    %v1818 = vld [vmem:[#allocation2 + $0x78] sm:$0xff]
    %v1819 = vadd.f32 %v1772, %v1803
    %v1820 = vadd.f32 %v1774, %v1804
    %v1821 = vadd.f32 %v1776, %v1805
    %v1822 = vadd.f32 %v1778, %v1806
    %v1823 = vadd.f32 %v1780, %v1807
    %v1824 = vadd.f32 %v1782, %v1808
    %v1825 = vadd.f32 %v1784, %v1809
    %v1826 = vadd.f32 %v1786, %v1810
    %v1827 = vadd.f32 %v1788, %v1811
    %v1828 = vadd.f32 %v1790, %v1812
    %v1829 = vadd.f32 %v1792, %v1813
    %v1830 = vadd.f32 %v1794, %v1814
    %v1831 = vadd.f32 %v1796, %v1815
    %v1832 = vadd.f32 %v1798, %v1816
    %v1833 = vadd.f32 %v1800, %v1817
    %v1834 = vadd.f32 %v1802, %v1818
    %v1835 = vsub.f32 %v1724, %v1819
    %v1836 = vsub.f32 %v1726, %v1820
    %v1837 = vsub.f32 %v1728, %v1821
    %v1838 = vsub.f32 %v1730, %v1822
    %v1839 = vsub.f32 %v1732, %v1823
    %v1840 = vsub.f32 %v1734, %v1824
    %v1841 = vsub.f32 %v1736, %v1825
    %v1842 = vsub.f32 %v1738, %v1826
    %v1843 = vsub.f32 %v1740, %v1827
    %v1844 = vsub.f32 %v1742, %v1828
    %v1845 = vsub.f32 %v1744, %v1829
    %v1846 = vsub.f32 %v1746, %v1830
    %v1847 = vsub.f32 %v1748, %v1831
    %v1848 = vsub.f32 %v1750, %v1832
    %v1849 = vsub.f32 %v1752, %v1833
    %v1850 = vsub.f32 %v1754, %v1834
    %v1851 = vmul.f32 %v1835, %v1675
    %v1852 = vmul.f32 %v1836, %v1676
    %v1853 = vmul.f32 %v1837, %v1677
    %v1854 = vmul.f32 %v1838, %v1678
    %v1855 = vmul.f32 %v1839, %v1679
    %v1856 = vmul.f32 %v1840, %v1680
    %v1857 = vmul.f32 %v1841, %v1681
    %v1858 = vmul.f32 %v1842, %v1682
    %v1859 = vmul.f32 %v1843, %v1683
    %v1860 = vmul.f32 %v1844, %v1684
    %v1861 = vmul.f32 %v1845, %v1685
    %v1862 = vmul.f32 %v1846, %v1686
    %v1863 = vmul.f32 %v1847, %v1687
    %v1864 = vmul.f32 %v1848, %v1688
    %v1865 = vmul.f32 %v1849, %v1689
    %v1866 = vmul.f32 %v1850, %v1690
    %v1867 = vsel %vm1087, %v1851, 0.0
    %v1868 = vsel %vm1087, %v1852, 0.0
    %v1869 = vadd.f32 %v1867, %v1868
    %v1870 = vsel %vm1087, %v1853, 0.0
    %v1871 = vadd.f32 %v1869, %v1870
    %v1872 = vsel %vm1087, %v1854, 0.0
    %v1873 = vadd.f32 %v1871, %v1872
    %v1874 = vsel %vm1087, %v1855, 0.0
    %v1875 = vadd.f32 %v1873, %v1874
    %v1876 = vsel %vm1087, %v1856, 0.0
    %v1877 = vadd.f32 %v1875, %v1876
    %v1878 = vsel %vm1087, %v1857, 0.0
    %v1879 = vadd.f32 %v1877, %v1878
    %v1880 = vsel %vm1087, %v1858, 0.0
    %v1881 = vadd.f32 %v1879, %v1880
    %v1882 = vsel %vm1087, %v1859, 0.0
    %v1883 = vadd.f32 %v1881, %v1882
    %v1884 = vsel %vm1087, %v1860, 0.0
    %v1885 = vadd.f32 %v1883, %v1884
    %v1886 = vsel %vm1087, %v1861, 0.0
    %v1887 = vadd.f32 %v1885, %v1886
    %v1888 = vsel %vm1087, %v1862, 0.0
    %v1889 = vadd.f32 %v1887, %v1888
    %v1890 = vsel %vm1087, %v1863, 0.0
    %v1891 = vadd.f32 %v1889, %v1890
    %v1892 = vsel %vm1087, %v1864, 0.0
    %v1893 = vadd.f32 %v1891, %v1892
    %v1894 = vsel %vm1087, %v1865, 0.0
    %v1895 = vadd.f32 %v1893, %v1894
    %v1896 = vsel %vm1087, %v1866, 0.0
    %v1897 = vadd.f32 %v1895, %v1896
    %v1898 = vrot.slane %v1897, 4
    %v1899 = vadd.f32 %v1897, %v1898
    %v1900 = vrot.slane %v1899, 2
    %v1901 = vadd.f32 %v1899, %v1900
    %v1902 = vrot.slane %v1901, 1
    %v1903 = vadd.f32 %v1901, %v1902
    %v1904 = vlaneseq
    %v1905 = vand.u32 %v1904, 127
    %v1906 = vld [vmem:[#allocation5] sm:$0x1]
    %vm1907 = vcmp.eq.s32.totalorder %v1610, 0
    %vm1908 = vcmp.eq.s32.totalorder %v1905, 0
    %vm1909 = vmand %vm1907, %vm1908
    %vm1910 = vcmp.eq.s32.totalorder %v1905, 1
    %vm1911 = vmand %vm1907, %vm1910
    %v1913 = vlaneseq
    %v1914 = vshrl.u32 %v1913, 7
    %v1915 = vsub.s32 0, %v1914
    %v1916 = vrot.slane %v1906, %v1915
    %1917 = vset.pattern.permute.xlu0 0
    %1918 = vperm.xlu0 %1917, %v1916
    %v1919 = vpop.permute.xlu0 %1918
    %v1921 = vsel %vm1911, %v1919, 0.0
    %1923 = vset.pattern.permute.xlu0 0
    %1924 = vperm.xlu0 %1923, %v1903
    %v1925 = vpop.permute.xlu0 %1924
    %v1927 = vsel %vm1909, %v1925, %v1921
    %1928 = vst [vmem:[%s6] sm:$0xff] %v1927
  $region41: #{multitask_loss.1} parent=0 // pred_fallthru
    _
  // Predicated region
  $region42: #{multitask_loss.1} parent=0 // pred_check
    _
  $region43: #{multitask_loss.1} parent=0 // pred_check_branch
    %1930 = sbr.rel (0) target = $region45
  $region44: #{multitask_loss.1} parent=0 // pred_region
    _
  $region45: #{multitask_loss.1} parent=0 // pred_fallthru
    _
  // Predicated region
  $region46: #{multitask_loss.1} parent=0 // pred_check
    _
  $region47: #{multitask_loss.1} parent=0 // pred_check_branch
    %1932 = sbr.rel (0) target = $region49
  $region48: #{multitask_loss.1} parent=0 // pred_region
    _
  $region49: #{multitask_loss.1} parent=0 // pred_fallthru
    _

</llo_original>
